<compile_context>
chip_gen: v7x
topology: tpu7x:2x2x1
jax: 0.10.0
libtpu: 0.0.40
codegen_flags: <defaults>
</compile_context>

<pallas_src>
import functools
import math

import jax
import jax.numpy as jnp
from jax.experimental import pallas as pl
from jax.experimental.pallas import tpu as pltpu


def _layer_norm(x, gamma, beta, eps=1e-5):
    # One-pass LN: compute E[x] and E[x^2] together; var = E[x^2] - mean^2.
    mean = jnp.mean(x, axis=-1, keepdims=True)
    mean_sq = jnp.mean(x * x, axis=-1, keepdims=True)
    var = mean_sq - mean * mean                     # biased var, like torch LN
    inv = jax.lax.rsqrt(var + eps)
    return (x - mean) * inv * gamma + beta


def encoder_stack_kernel(x_ref, wqkv_ref, bqkv_ref, wo_ref, bo_ref,
                         w1_ref, b1_ref, w2_ref, b2_ref,
                         g1_ref, bt1_ref, g2_ref, bt2_ref,
                         out_ref, *, batch, seq, num_heads, negative_slope):
    """One grid step == one full encoder layer; activations live in out_ref (VMEM)."""
    l = pl.program_id(0)
    num_layers = pl.num_programs(0)
    B, S, H = batch, seq, num_heads
    N, E = out_ref.shape                                   # N = B * S
    d = E // H

    @pl.when(l == 0)
    def _():                                               # load activations once
        out_ref[...] = x_ref[...]

    x = out_ref[...]                                       # (N, E)

    # ---------------- fused QKV projection (lane-dense, scale folded into q) -----
    qkv = jnp.dot(x, wqkv_ref[...],
                  preferred_element_type=jnp.float32) + bqkv_ref[...]   # (N, 3E)

    # Stage per-(head,batch) tensors: static lane slices + tile-aligned reshapes
    # (16 -> (2,8) sublane split is at the 8-row tile boundary) + leading concat.
    qs, ks, vs = [], [], []
    for h in range(H):                                     # H static, staging only
        qs.append(qkv[:, h * d:(h + 1) * d].reshape(B, S, d))
        ks.append(qkv[:, E + h * d:E + (h + 1) * d].reshape(B, S, d))
        vs.append(qkv[:, 2 * E + h * d:2 * E + (h + 1) * d].reshape(B, S, d))
    qg = jnp.concatenate(qs, axis=0)                       # (H*B, S, d), g = h*B + b
    kg = jnp.concatenate(ks, axis=0)
    vg = jnp.concatenate(vs, axis=0)

    # ---------------- attention: one batched score / context contraction ---------
    s = jnp.einsum('gqd,gkd->gqk', qg, kg,
                   preferred_element_type=jnp.float32)     # (G, S, S)
    s = s - jnp.max(s, axis=-1, keepdims=True)
    p = jnp.exp(s)
    p = p * pl.reciprocal(jnp.sum(p, axis=-1, keepdims=True), approx=True)
    ctx = jnp.einsum('gqk,gkd->gqd', p, vg,
                     preferred_element_type=jnp.float32)   # (G, S, d)

    # Head merge fused into the output projection: repack heads onto lanes
    # (head-major, matching torch's concat order), then one (N,E)@(E,E) matmul.
    ctx_flat = jnp.concatenate(
        [ctx[h * B:(h + 1) * B].reshape(N, d) for h in range(H)], axis=-1)  # (N, E)
    attn = jnp.dot(ctx_flat, wo_ref[...],
                   preferred_element_type=jnp.float32) + bo_ref[...]        # (N, E)

    x1 = _layer_norm(x + attn, g1_ref[...], bt1_ref[...])

    # ---------------- feed forward (relu, dim_feedforward = 2E) -------------------
    h1 = jnp.dot(x1, w1_ref[...], preferred_element_type=jnp.float32) + b1_ref[...]
    h1 = jnp.maximum(h1, 0.0)
    h2 = jnp.dot(h1, w2_ref[...], preferred_element_type=jnp.float32) + b2_ref[...]

    y = _layer_norm(x1 + h2, g2_ref[...], bt2_ref[...])
    out_ref[...] = y                                       # carry to next layer

    @pl.when(l == num_layers - 1)
    def _():                                               # fused final leaky_relu
        out_ref[...] = jnp.where(y >= 0, y, negative_slope * y)


def prepare_params(layers, num_heads):
    """Stack torch-shaped per-layer weights into (L, ...) arrays in kernel layout."""
    E = layers[0]["out_proj_weight"].shape[0]
    scale = 1.0 / math.sqrt(E // num_heads)

    def qkv_weight(p):
        w = p["in_proj_weight"].T                          # (E, 3E), cols = [q|k|v], head-major
        return jnp.concatenate([w[:, :E] * scale, w[:, E:]], axis=1)

    def qkv_bias(p):
        b = p["in_proj_bias"]
        return jnp.concatenate([b[:E] * scale, b[E:]]).reshape(1, 3 * E)

    stacked = {}

    def add(name, fn):
        stacked[name] = jnp.stack([fn(p) for p in layers], axis=0)

    add("wqkv", qkv_weight)
    add("bqkv", qkv_bias)
    add("wo", lambda p: p["out_proj_weight"].T)            # (E, E), rows head-major
    add("bo", lambda p: p["out_proj_bias"].reshape(1, E))
    add("w1", lambda p: p["lin1_weight"].T)
    add("b1", lambda p: p["lin1_bias"].reshape(1, -1))
    add("w2", lambda p: p["lin2_weight"].T)
    add("b2", lambda p: p["lin2_bias"].reshape(1, -1))
    add("g1", lambda p: p["ln1_gamma"].reshape(1, E))
    add("bt1", lambda p: p["ln1_beta"].reshape(1, E))
    add("g2", lambda p: p["ln2_gamma"].reshape(1, E))
    add("bt2", lambda p: p["ln2_beta"].reshape(1, E))
    return stacked


def transformer_encoder(features, stacked, num_heads):
    """features: (S, B, E) float32 -> same shape, == leaky_relu(TransformerEncoder(features))."""
    S, B, E = features.shape
    H = num_heads
    d = E // H
    N = B * S
    L = stacked["wqkv"].shape[0]
    F = stacked["w1"].shape[-1]

    x = jnp.transpose(features, (1, 0, 2)).reshape(N, E).astype(jnp.float32)

    order = ["wqkv", "bqkv", "wo", "bo", "w1", "b1", "w2", "b2",
             "g1", "bt1", "g2", "bt2"]
    weight_args = [stacked[k] for k in order]

    def wspec(arr):
        rest = arr.shape[1:]
        return pl.BlockSpec((None,) + rest,                      # squeeze the layer axis
                            lambda l, _n=len(rest): (l,) + (0,) * _n)

    slab_spec = pl.BlockSpec((N, E), lambda l: (0, 0))           # resident across layers

    flops = L * (2 * N * E * 3 * E                               # fused QKV projection
                 + 4 * B * H * S * S * d                         # scores + context
                 + 2 * N * E * E                                 # output projection
                 + 4 * N * E * F)                                # FFN
    transcendentals = L * B * H * S * S                          # softmax exps
    bytes_accessed = 4 * (sum(a.size for a in weight_args) + 2 * N * E)

    out = pl.pallas_call(
        functools.partial(encoder_stack_kernel, batch=B, seq=S,
                          num_heads=H, negative_slope=0.01),
        out_shape=jax.ShapeDtypeStruct((N, E), jnp.float32),
        grid=(L,),
        in_specs=[slab_spec] + [wspec(a) for a in weight_args],
        out_specs=slab_spec,
        compiler_params=pltpu.CompilerParams(
            dimension_semantics=("arbitrary",)),                 # layers are sequential
        cost_estimate=pl.CostEstimate(flops=flops,
                                      transcendentals=transcendentals,
                                      bytes_accessed=bytes_accessed),
    )(x, *weight_args)

    return jnp.transpose(out.reshape(B, S, E), (1, 0, 2))        # back to (S, B, E)


def init_params(key, in_dim, num_heads, num_layers):
    """Deterministic synthetic weights with the exact shapes nn.TransformerEncoderLayer uses."""
    E = in_dim
    ff = 2 * E
    assert E % num_heads == 0
    layers = []
    for _ in range(num_layers):
        key, *ks = jax.random.split(key, 11)
        layers.append(dict(
            in_proj_weight=jax.random.normal(ks[0], (3 * E, E), jnp.float32) * 0.05,
            in_proj_bias=jax.random.normal(ks[1], (3 * E,), jnp.float32) * 0.01,
            out_proj_weight=jax.random.normal(ks[2], (E, E), jnp.float32) * 0.05,
            out_proj_bias=jax.random.normal(ks[3], (E,), jnp.float32) * 0.01,
            lin1_weight=jax.random.normal(ks[4], (ff, E), jnp.float32) * 0.05,
            lin1_bias=jax.random.normal(ks[5], (ff,), jnp.float32) * 0.01,
            lin2_weight=jax.random.normal(ks[6], (E, ff), jnp.float32) * 0.05,
            lin2_bias=jax.random.normal(ks[7], (E,), jnp.float32) * 0.01,
            ln1_gamma=jnp.ones((E,), jnp.float32) + jax.random.normal(ks[8], (E,), jnp.float32) * 0.01,
            ln1_beta=jax.random.normal(ks[9], (E,), jnp.float32) * 0.01,
            ln2_gamma=jnp.ones((E,), jnp.float32),
            ln2_beta=jnp.zeros((E,), jnp.float32),
        ))
    return layers


def transformer_encoder_reference(features, layers, num_heads):
    """Pure-JAX mirror of PyTorch post-norm TransformerEncoder + leaky_relu (for checking)."""
    S, B, E = features.shape
    H = num_heads
    d = E // H
    x = features.astype(jnp.float32)                      # (S, B, E)

    def ln(v, g, b):
        m = jnp.mean(v, -1, keepdims=True)
        var = jnp.mean((v - m) ** 2, -1, keepdims=True)
        return (v - m) / jnp.sqrt(var + 1e-5) * g + b

    for p in layers:
        wq, wk, wv = jnp.split(p["in_proj_weight"], 3, axis=0)
        bq, bk, bv = jnp.split(p["in_proj_bias"], 3)
        q, k, v = x @ wq.T + bq, x @ wk.T + bk, x @ wv.T + bv

        def heads(t):                                     # (S,B,E) -> (B,H,S,d)
            return jnp.transpose(t.reshape(S, B, H, d), (1, 2, 0, 3))
        qh, kh, vh = heads(q), heads(k), heads(v)
        s = jnp.einsum('bhqd,bhkd->bhqk', qh, kh) / math.sqrt(d)
        pr = jax.nn.softmax(s, axis=-1)
        ctx = jnp.einsum('bhqk,bhkd->bhqd', pr, vh)
        ctx = jnp.transpose(ctx, (2, 0, 1, 3)).reshape(S, B, E)
        attn = ctx @ p["out_proj_weight"].T + p["out_proj_bias"]
        x = ln(x + attn, p["ln1_gamma"], p["ln1_beta"])
        h = jnp.maximum(x @ p["lin1_weight"].T + p["lin1_bias"], 0.0)
        h = h @ p["lin2_weight"].T + p["lin2_bias"]
        x = ln(x + h, p["ln2_gamma"], p["ln2_beta"])
    return jnp.where(x >= 0, x, 0.01 * x)


if __name__ == "__main__":
    in_dim, num_heads, num_layers = 32, 4, 2
    chunk_size, batch_times_chunks = 8, 2                 # features: (S, B, E) = (8, 2, 32)

    key = jax.random.PRNGKey(0)
    pkey, xkey = jax.random.split(key)
    layers = init_params(pkey, in_dim, num_heads, num_layers)
    stacked = prepare_params(layers, num_heads)
    features = jax.random.normal(xkey, (chunk_size, batch_times_chunks, in_dim), jnp.float32)

    out = transformer_encoder(features, stacked, num_heads)
    out = jax.block_until_ready(out)
    assert out.shape == features.shape and out.dtype == jnp.float32

    ref = transformer_encoder_reference(features, layers, num_heads)
    max_err = float(jnp.max(jnp.abs(out - ref)))
    assert max_err < 2e-2, max_err                        # approx-reciprocal / 1-pass-LN tolerance

    print("KERNEL_OK")
</pallas_src>

<mosaic_0001>
module attributes {stable_mosaic.version = 11 : i64} {
  func.func @encoder_stack_kernel(%arg0: i32, %arg1: memref<16x32xf32, #tpu.memory_space<vmem>>, %arg2: memref<1x32x96xf32, #tpu.memory_space<vmem>>, %arg3: memref<1x1x96xf32, #tpu.memory_space<vmem>>, %arg4: memref<1x32x32xf32, #tpu.memory_space<vmem>>, %arg5: memref<1x1x32xf32, #tpu.memory_space<vmem>>, %arg6: memref<1x32x64xf32, #tpu.memory_space<vmem>>, %arg7: memref<1x1x64xf32, #tpu.memory_space<vmem>>, %arg8: memref<1x64x32xf32, #tpu.memory_space<vmem>>, %arg9: memref<1x1x32xf32, #tpu.memory_space<vmem>>, %arg10: memref<1x1x32xf32, #tpu.memory_space<vmem>>, %arg11: memref<1x1x32xf32, #tpu.memory_space<vmem>>, %arg12: memref<1x1x32xf32, #tpu.memory_space<vmem>>, %arg13: memref<1x1x32xf32, #tpu.memory_space<vmem>>, %arg14: memref<16x32xf32, #tpu.memory_space<vmem>>) attributes {dimension_semantics = [#tpu.dimension_semantics<arbitrary>], iteration_bounds = array<i64: 2>, scalar_prefetch = 0 : i64, scratch_operands = 0 : i64, tpu.core_type = #tpu.core_type<tc>, window_params = [{pipeline_mode = #tpu.pipeline_mode<synchronous>, transform_indices = @transform_0, window_bounds = array<i64: 16, 32>}, {transform_indices = @transform_1, window_bounds = array<i64: 1, 32, 96>}, {transform_indices = @transform_2, window_bounds = array<i64: 1, 1, 96>}, {transform_indices = @transform_3, window_bounds = array<i64: 1, 32, 32>}, {transform_indices = @transform_4, window_bounds = array<i64: 1, 1, 32>}, {transform_indices = @transform_5, window_bounds = array<i64: 1, 32, 64>}, {transform_indices = @transform_6, window_bounds = array<i64: 1, 1, 64>}, {transform_indices = @transform_7, window_bounds = array<i64: 1, 64, 32>}, {transform_indices = @transform_8, window_bounds = array<i64: 1, 1, 32>}, {transform_indices = @transform_9, window_bounds = array<i64: 1, 1, 32>}, {transform_indices = @transform_10, window_bounds = array<i64: 1, 1, 32>}, {transform_indices = @transform_11, window_bounds = array<i64: 1, 1, 32>}, {transform_indices = @transform_12, window_bounds = array<i64: 1, 1, 32>}, {pipeline_mode = #tpu.pipeline_mode<synchronous>, transform_indices = @transform_13, window_bounds = array<i64: 16, 32>}]} {
    %c0_i32 = arith.constant 0 : i32
    %0 = arith.cmpi eq, %arg0, %c0_i32 : i32
    %1 = arith.extui %0 : i1 to i32
    %c0_i32_0 = arith.constant 0 : i32
    %2 = arith.cmpi ne, %1, %c0_i32_0 : i32
    scf.if %2 {
      %c0_59 = arith.constant 0 : index
      %c0_60 = arith.constant 0 : index
      %140 = vector.load %arg1[%c0_59, %c0_60] : memref<16x32xf32, #tpu.memory_space<vmem>>, vector<16x32xf32>
      %c0_61 = arith.constant 0 : index
      %c0_62 = arith.constant 0 : index
      %141 = vector.load %arg14[%c0_61, %c0_62] : memref<16x32xf32, #tpu.memory_space<vmem>>, vector<16x32xf32>
      tpu.vector_store %arg14[%c0_61, %c0_62], %140 {strides = array<i32>} : memref<16x32xf32, #tpu.memory_space<vmem>>, vector<16x32xf32>,
    } else {
    }
    %c0 = arith.constant 0 : index
    %c0_1 = arith.constant 0 : index
    %3 = vector.load %arg14[%c0, %c0_1] : memref<16x32xf32, #tpu.memory_space<vmem>>, vector<16x32xf32>
    %c0_2 = arith.constant 0 : index
    %c0_3 = arith.constant 0 : index
    %c0_4 = arith.constant 0 : index
    %4 = vector.load %arg2[%c0_2, %c0_3, %c0_4] : memref<1x32x96xf32, #tpu.memory_space<vmem>>, vector<1x32x96xf32>
    %5 = vector.shape_cast %4 : vector<1x32x96xf32> to vector<32x96xf32>
    %cst = arith.constant dense<0.000000e+00> : vector<16x96xf32>
    %6 = tpu.matmul %3, %5, %cst {dimension_numbers = #tpu.dot_dimension_numbers<[1], [0], [0], [1], [0, 0, 1, 1], [], []>} : vector<16x32xf32>, vector<32x96xf32>, vector<16x96xf32> -> vector<16x96xf32>
    %c0_5 = arith.constant 0 : index
    %c0_6 = arith.constant 0 : index
    %c0_7 = arith.constant 0 : index
    %7 = vector.load %arg3[%c0_5, %c0_6, %c0_7] : memref<1x1x96xf32, #tpu.memory_space<vmem>>, vector<1x1x96xf32>
    %8 = vector.shape_cast %7 : vector<1x1x96xf32> to vector<1x96xf32>
    %9 = vector.broadcast %8 : vector<1x96xf32> to vector<16x96xf32>
    %10 = arith.addf %6, %9 : vector<16x96xf32>
    %11 = vector.extract_strided_slice %10 {offsets = [0, 0], sizes = [16, 8], strides = [1, 1]} : vector<16x96xf32> to vector<16x8xf32>
    %12 = vector.shape_cast %11 : vector<16x8xf32> to vector<2x8x8xf32>
    %13 = vector.extract_strided_slice %10 {offsets = [0, 32], sizes = [16, 8], strides = [1, 1]} : vector<16x96xf32> to vector<16x8xf32>
    %14 = vector.shape_cast %13 : vector<16x8xf32> to vector<2x8x8xf32>
    %15 = vector.extract_strided_slice %10 {offsets = [0, 64], sizes = [16, 8], strides = [1, 1]} : vector<16x96xf32> to vector<16x8xf32>
    %16 = vector.shape_cast %15 : vector<16x8xf32> to vector<2x8x8xf32>
    %17 = vector.extract_strided_slice %10 {offsets = [0, 8], sizes = [16, 8], strides = [1, 1]} : vector<16x96xf32> to vector<16x8xf32>
    %18 = vector.shape_cast %17 : vector<16x8xf32> to vector<2x8x8xf32>
    %19 = vector.extract_strided_slice %10 {offsets = [0, 40], sizes = [16, 8], strides = [1, 1]} : vector<16x96xf32> to vector<16x8xf32>
    %20 = vector.shape_cast %19 : vector<16x8xf32> to vector<2x8x8xf32>
    %21 = vector.extract_strided_slice %10 {offsets = [0, 72], sizes = [16, 8], strides = [1, 1]} : vector<16x96xf32> to vector<16x8xf32>
    %22 = vector.shape_cast %21 : vector<16x8xf32> to vector<2x8x8xf32>
    %23 = vector.extract_strided_slice %10 {offsets = [0, 16], sizes = [16, 8], strides = [1, 1]} : vector<16x96xf32> to vector<16x8xf32>
    %24 = vector.shape_cast %23 : vector<16x8xf32> to vector<2x8x8xf32>
    %25 = vector.extract_strided_slice %10 {offsets = [0, 48], sizes = [16, 8], strides = [1, 1]} : vector<16x96xf32> to vector<16x8xf32>
    %26 = vector.shape_cast %25 : vector<16x8xf32> to vector<2x8x8xf32>
    %27 = vector.extract_strided_slice %10 {offsets = [0, 80], sizes = [16, 8], strides = [1, 1]} : vector<16x96xf32> to vector<16x8xf32>
    %28 = vector.shape_cast %27 : vector<16x8xf32> to vector<2x8x8xf32>
    %29 = vector.extract_strided_slice %10 {offsets = [0, 24], sizes = [16, 8], strides = [1, 1]} : vector<16x96xf32> to vector<16x8xf32>
    %30 = vector.shape_cast %29 : vector<16x8xf32> to vector<2x8x8xf32>
    %31 = vector.extract_strided_slice %10 {offsets = [0, 56], sizes = [16, 8], strides = [1, 1]} : vector<16x96xf32> to vector<16x8xf32>
    %32 = vector.shape_cast %31 : vector<16x8xf32> to vector<2x8x8xf32>
    %33 = vector.extract_strided_slice %10 {offsets = [0, 88], sizes = [16, 8], strides = [1, 1]} : vector<16x96xf32> to vector<16x8xf32>
    %34 = vector.shape_cast %33 : vector<16x8xf32> to vector<2x8x8xf32>
    %35 = tpu.concatenate %12, %18, %24, %30 in 0 : vector<2x8x8xf32>, vector<2x8x8xf32>, vector<2x8x8xf32>, vector<2x8x8xf32> -> vector<8x8x8xf32>
    %36 = tpu.concatenate %14, %20, %26, %32 in 0 : vector<2x8x8xf32>, vector<2x8x8xf32>, vector<2x8x8xf32>, vector<2x8x8xf32> -> vector<8x8x8xf32>
    %37 = tpu.concatenate %16, %22, %28, %34 in 0 : vector<2x8x8xf32>, vector<2x8x8xf32>, vector<2x8x8xf32>, vector<2x8x8xf32> -> vector<8x8x8xf32>
    "tpu.trace_start"() <{level = 10 : i32, message = "gqd,gkd->gqk"}> : () -> ()
    %cst_8 = arith.constant dense<0.000000e+00> : vector<8x8x8xf32>
    %38 = tpu.matmul %35, %36, %cst_8 {dimension_numbers = #tpu.dot_dimension_numbers<[2], [2], [1], [1], [0, 0, 0, 1, 1, 1], [0], [0]>} : vector<8x8x8xf32>, vector<8x8x8xf32>, vector<8x8x8xf32> -> vector<8x8x8xf32>
    "tpu.trace_stop"() : () -> ()
    %cst_9 = arith.constant dense<0xFF800000> : vector<8x8xf32>
    %39 = vector.multi_reduction <maximumf>, %38, %cst_9 [2] : vector<8x8x8xf32> to vector<8x8xf32>
    %40 = vector.shape_cast %39 : vector<8x8xf32> to vector<8x8x1xf32>
    %41 = vector.broadcast %40 : vector<8x8x1xf32> to vector<8x8x8xf32>
    %42 = arith.subf %38, %41 : vector<8x8x8xf32>
    %43 = math.exp %42 : vector<8x8x8xf32>
    %cst_10 = arith.constant dense<0.000000e+00> : vector<8x8xf32>
    %44 = vector.multi_reduction <add>, %43, %cst_10 [2] : vector<8x8x8xf32> to vector<8x8xf32>
    %45 = vector.shape_cast %44 : vector<8x8xf32> to vector<8x8x1xf32>
    %46 = tpu.reciprocal %45 {approx = true} : vector<8x8x1xf32> -> vector<8x8x1xf32>
    %47 = vector.broadcast %46 : vector<8x8x1xf32> to vector<8x8x8xf32>
    %48 = arith.mulf %43, %47 : vector<8x8x8xf32>
    "tpu.trace_start"() <{level = 10 : i32, message = "gqk,gkd->gqd"}> : () -> ()
    %cst_11 = arith.constant dense<0.000000e+00> : vector<8x8x8xf32>
    %49 = tpu.matmul %48, %37, %cst_11 {dimension_numbers = #tpu.dot_dimension_numbers<[2], [1], [1], [2], [0, 0, 0, 1, 1, 2], [0], [0]>} : vector<8x8x8xf32>, vector<8x8x8xf32>, vector<8x8x8xf32> -> vector<8x8x8xf32>
    "tpu.trace_stop"() : () -> ()
    %50 = vector.extract_strided_slice %49 {offsets = [0, 0, 0], sizes = [2, 8, 8], strides = [1, 1, 1]} : vector<8x8x8xf32> to vector<2x8x8xf32>
    %51 = vector.shape_cast %50 : vector<2x8x8xf32> to vector<16x8xf32>
    %52 = vector.extract_strided_slice %49 {offsets = [2, 0, 0], sizes = [2, 8, 8], strides = [1, 1, 1]} : vector<8x8x8xf32> to vector<2x8x8xf32>
    %53 = vector.shape_cast %52 : vector<2x8x8xf32> to vector<16x8xf32>
    %54 = vector.extract_strided_slice %49 {offsets = [4, 0, 0], sizes = [2, 8, 8], strides = [1, 1, 1]} : vector<8x8x8xf32> to vector<2x8x8xf32>
    %55 = vector.shape_cast %54 : vector<2x8x8xf32> to vector<16x8xf32>
    %56 = vector.extract_strided_slice %49 {offsets = [6, 0, 0], sizes = [2, 8, 8], strides = [1, 1, 1]} : vector<8x8x8xf32> to vector<2x8x8xf32>
    %57 = vector.shape_cast %56 : vector<2x8x8xf32> to vector<16x8xf32>
    %58 = tpu.concatenate %51, %53, %55, %57 in 1 : vector<16x8xf32>, vector<16x8xf32>, vector<16x8xf32>, vector<16x8xf32> -> vector<16x32xf32>
    %c0_12 = arith.constant 0 : index
    %c0_13 = arith.constant 0 : index
    %c0_14 = arith.constant 0 : index
    %59 = vector.load %arg4[%c0_12, %c0_13, %c0_14] : memref<1x32x32xf32, #tpu.memory_space<vmem>>, vector<1x32x32xf32>
    %60 = vector.shape_cast %59 : vector<1x32x32xf32> to vector<32x32xf32>
    %cst_15 = arith.constant dense<0.000000e+00> : vector<16x32xf32>
    %61 = tpu.matmul %58, %60, %cst_15 {dimension_numbers = #tpu.dot_dimension_numbers<[1], [0], [0], [1], [0, 0, 1, 1], [], []>} : vector<16x32xf32>, vector<32x32xf32>, vector<16x32xf32> -> vector<16x32xf32>
    %c0_16 = arith.constant 0 : index
    %c0_17 = arith.constant 0 : index
    %c0_18 = arith.constant 0 : index
    %62 = vector.load %arg5[%c0_16, %c0_17, %c0_18] : memref<1x1x32xf32, #tpu.memory_space<vmem>>, vector<1x1x32xf32>
    %63 = vector.shape_cast %62 : vector<1x1x32xf32> to vector<1x32xf32>
    %64 = vector.broadcast %63 : vector<1x32xf32> to vector<16x32xf32>
    %65 = arith.addf %61, %64 : vector<16x32xf32>
    %66 = arith.addf %3, %65 : vector<16x32xf32>
    %c0_19 = arith.constant 0 : index
    %c0_20 = arith.constant 0 : index
    %c0_21 = arith.constant 0 : index
    %67 = vector.load %arg10[%c0_19, %c0_20, %c0_21] : memref<1x1x32xf32, #tpu.memory_space<vmem>>, vector<1x1x32xf32>
    %68 = vector.shape_cast %67 : vector<1x1x32xf32> to vector<1x32xf32>
    %c0_22 = arith.constant 0 : index
    %c0_23 = arith.constant 0 : index
    %c0_24 = arith.constant 0 : index
    %69 = vector.load %arg11[%c0_22, %c0_23, %c0_24] : memref<1x1x32xf32, #tpu.memory_space<vmem>>, vector<1x1x32xf32>
    %70 = vector.shape_cast %69 : vector<1x1x32xf32> to vector<1x32xf32>
    %cst_25 = arith.constant dense<0.000000e+00> : vector<16xf32>
    %71 = vector.multi_reduction <add>, %66, %cst_25 [1] : vector<16x32xf32> to vector<16xf32>
    %72 = vector.shape_cast %71 : vector<16xf32> to vector<16x1xf32>
    %cst_26 = arith.constant 3.200000e+01 : f32
    %73 = vector.broadcast %cst_26 : f32 to vector<16x1xf32>
    %74 = arith.divf %72, %73 : vector<16x1xf32>
    %75 = arith.mulf %66, %66 : vector<16x32xf32>
    %cst_27 = arith.constant dense<0.000000e+00> : vector<16xf32>
    %76 = vector.multi_reduction <add>, %75, %cst_27 [1] : vector<16x32xf32> to vector<16xf32>
    %77 = vector.shape_cast %76 : vector<16xf32> to vector<16x1xf32>
    %cst_28 = arith.constant 3.200000e+01 : f32
    %78 = vector.broadcast %cst_28 : f32 to vector<16x1xf32>
    %79 = arith.divf %77, %78 : vector<16x1xf32>
    %80 = arith.mulf %74, %74 : vector<16x1xf32>
    %81 = arith.subf %79, %80 : vector<16x1xf32>
    %cst_29 = arith.constant 9.99999974E-6 : f32
    %82 = vector.broadcast %cst_29 : f32 to vector<16x1xf32>
    %83 = arith.addf %81, %82 : vector<16x1xf32>
    %84 = math.rsqrt %83 : vector<16x1xf32>
    %85 = vector.broadcast %74 : vector<16x1xf32> to vector<16x32xf32>
    %86 = arith.subf %66, %85 : vector<16x32xf32>
    %87 = vector.broadcast %84 : vector<16x1xf32> to vector<16x32xf32>
    %88 = arith.mulf %86, %87 : vector<16x32xf32>
    %89 = vector.broadcast %68 : vector<1x32xf32> to vector<16x32xf32>
    %90 = arith.mulf %88, %89 : vector<16x32xf32>
    %91 = vector.broadcast %70 : vector<1x32xf32> to vector<16x32xf32>
    %92 = arith.addf %90, %91 : vector<16x32xf32>
    %c0_30 = arith.constant 0 : index
    %c0_31 = arith.constant 0 : index
    %c0_32 = arith.constant 0 : index
    %93 = vector.load %arg6[%c0_30, %c0_31, %c0_32] : memref<1x32x64xf32, #tpu.memory_space<vmem>>, vector<1x32x64xf32>
    %94 = vector.shape_cast %93 : vector<1x32x64xf32> to vector<32x64xf32>
    %cst_33 = arith.constant dense<0.000000e+00> : vector<16x64xf32>
    %95 = tpu.matmul %92, %94, %cst_33 {dimension_numbers = #tpu.dot_dimension_numbers<[1], [0], [0], [1], [0, 0, 1, 1], [], []>} : vector<16x32xf32>, vector<32x64xf32>, vector<16x64xf32> -> vector<16x64xf32>
    %c0_34 = arith.constant 0 : index
    %c0_35 = arith.constant 0 : index
    %c0_36 = arith.constant 0 : index
    %96 = vector.load %arg7[%c0_34, %c0_35, %c0_36] : memref<1x1x64xf32, #tpu.memory_space<vmem>>, vector<1x1x64xf32>
    %97 = vector.shape_cast %96 : vector<1x1x64xf32> to vector<1x64xf32>
    %98 = vector.broadcast %97 : vector<1x64xf32> to vector<16x64xf32>
    %99 = arith.addf %95, %98 : vector<16x64xf32>
    %cst_37 = arith.constant 0.000000e+00 : f32
    %100 = vector.broadcast %cst_37 : f32 to vector<16x64xf32>
    %101 = arith.maximumf %99, %100 : vector<16x64xf32>
    %c0_38 = arith.constant 0 : index
    %c0_39 = arith.constant 0 : index
    %c0_40 = arith.constant 0 : index
    %102 = vector.load %arg8[%c0_38, %c0_39, %c0_40] : memref<1x64x32xf32, #tpu.memory_space<vmem>>, vector<1x64x32xf32>
    %103 = vector.shape_cast %102 : vector<1x64x32xf32> to vector<64x32xf32>
    %cst_41 = arith.constant dense<0.000000e+00> : vector<16x32xf32>
    %104 = tpu.matmul %101, %103, %cst_41 {dimension_numbers = #tpu.dot_dimension_numbers<[1], [0], [0], [1], [0, 0, 1, 1], [], []>} : vector<16x64xf32>, vector<64x32xf32>, vector<16x32xf32> -> vector<16x32xf32>
    %c0_42 = arith.constant 0 : index
    %c0_43 = arith.constant 0 : index
    %c0_44 = arith.constant 0 : index
    %105 = vector.load %arg9[%c0_42, %c0_43, %c0_44] : memref<1x1x32xf32, #tpu.memory_space<vmem>>, vector<1x1x32xf32>
    %106 = vector.shape_cast %105 : vector<1x1x32xf32> to vector<1x32xf32>
    %107 = vector.broadcast %106 : vector<1x32xf32> to vector<16x32xf32>
    %108 = arith.addf %104, %107 : vector<16x32xf32>
    %109 = arith.addf %92, %108 : vector<16x32xf32>
    %c0_45 = arith.constant 0 : index
    %c0_46 = arith.constant 0 : index
    %c0_47 = arith.constant 0 : index
    %110 = vector.load %arg12[%c0_45, %c0_46, %c0_47] : memref<1x1x32xf32, #tpu.memory_space<vmem>>, vector<1x1x32xf32>
    %111 = vector.shape_cast %110 : vector<1x1x32xf32> to vector<1x32xf32>
    %c0_48 = arith.constant 0 : index
    %c0_49 = arith.constant 0 : index
    %c0_50 = arith.constant 0 : index
    %112 = vector.load %arg13[%c0_48, %c0_49, %c0_50] : memref<1x1x32xf32, #tpu.memory_space<vmem>>, vector<1x1x32xf32>
    %113 = vector.shape_cast %112 : vector<1x1x32xf32> to vector<1x32xf32>
    %cst_51 = arith.constant dense<0.000000e+00> : vector<16xf32>
    %114 = vector.multi_reduction <add>, %109, %cst_51 [1] : vector<16x32xf32> to vector<16xf32>
    %115 = vector.shape_cast %114 : vector<16xf32> to vector<16x1xf32>
    %cst_52 = arith.constant 3.200000e+01 : f32
    %116 = vector.broadcast %cst_52 : f32 to vector<16x1xf32>
    %117 = arith.divf %115, %116 : vector<16x1xf32>
    %118 = arith.mulf %109, %109 : vector<16x32xf32>
    %cst_53 = arith.constant dense<0.000000e+00> : vector<16xf32>
    %119 = vector.multi_reduction <add>, %118, %cst_53 [1] : vector<16x32xf32> to vector<16xf32>
    %120 = vector.shape_cast %119 : vector<16xf32> to vector<16x1xf32>
    %cst_54 = arith.constant 3.200000e+01 : f32
    %121 = vector.broadcast %cst_54 : f32 to vector<16x1xf32>
    %122 = arith.divf %120, %121 : vector<16x1xf32>
    %123 = arith.mulf %117, %117 : vector<16x1xf32>
    %124 = arith.subf %122, %123 : vector<16x1xf32>
    %cst_55 = arith.constant 9.99999974E-6 : f32
    %125 = vector.broadcast %cst_55 : f32 to vector<16x1xf32>
    %126 = arith.addf %124, %125 : vector<16x1xf32>
    %127 = math.rsqrt %126 : vector<16x1xf32>
    %128 = vector.broadcast %117 : vector<16x1xf32> to vector<16x32xf32>
    %129 = arith.subf %109, %128 : vector<16x32xf32>
    %130 = vector.broadcast %127 : vector<16x1xf32> to vector<16x32xf32>
    %131 = arith.mulf %129, %130 : vector<16x32xf32>
    %132 = vector.broadcast %111 : vector<1x32xf32> to vector<16x32xf32>
    %133 = arith.mulf %131, %132 : vector<16x32xf32>
    %134 = vector.broadcast %113 : vector<1x32xf32> to vector<16x32xf32>
    %135 = arith.addf %133, %134 : vector<16x32xf32>
    %c0_56 = arith.constant 0 : index
    %c0_57 = arith.constant 0 : index
    %136 = vector.load %arg14[%c0_56, %c0_57] : memref<16x32xf32, #tpu.memory_space<vmem>>, vector<16x32xf32>
    tpu.vector_store %arg14[%c0_56, %c0_57], %135 {strides = array<i32>} : memref<16x32xf32, #tpu.memory_space<vmem>>, vector<16x32xf32>,
    %c1_i32 = arith.constant 1 : i32
    %137 = arith.cmpi eq, %arg0, %c1_i32 : i32
    %138 = arith.extui %137 : i1 to i32
    %c0_i32_58 = arith.constant 0 : i32
    %139 = arith.cmpi ne, %138, %c0_i32_58 : i32
    scf.if %139 {
      %cst_59 = arith.constant 0.000000e+00 : f32
      %140 = vector.broadcast %cst_59 : f32 to vector<16x32xf32>
      %141 = arith.cmpf oge, %135, %140 : vector<16x32xf32>
      %cst_60 = arith.constant 0.00999999977 : f32
      %142 = vector.broadcast %cst_60 : f32 to vector<16x32xf32>
      %143 = arith.mulf %142, %135 : vector<16x32xf32>
      %144 = arith.select %141, %135, %143 : vector<16x32xi1>, vector<16x32xf32>
      %c0_61 = arith.constant 0 : index
      %c0_62 = arith.constant 0 : index
      %145 = vector.load %arg14[%c0_61, %c0_62] : memref<16x32xf32, #tpu.memory_space<vmem>>, vector<16x32xf32>
      tpu.vector_store %arg14[%c0_61, %c0_62], %144 {strides = array<i32>} : memref<16x32xf32, #tpu.memory_space<vmem>>, vector<16x32xf32>,
    } else {
    }
    return
  }
  func.func @transform_0(%arg0: i32) -> (i32, i32) {
    %c0_i32 = arith.constant 0 : i32
    %c0_i32_0 = arith.constant 0 : i32
    %c0_i32_1 = arith.constant 0 : i32
    return %c0_i32, %c0_i32_0 : i32, i32
  }
  func.func @transform_1(%arg0: i32) -> (i32, i32, i32) {
    %c0_i32 = arith.constant 0 : i32
    %c0_i32_0 = arith.constant 0 : i32
    %c0_i32_1 = arith.constant 0 : i32
    return %arg0, %c0_i32, %c0_i32_0 : i32, i32, i32
  }
  func.func @transform_2(%arg0: i32) -> (i32, i32, i32) {
    %c0_i32 = arith.constant 0 : i32
    %c0_i32_0 = arith.constant 0 : i32
    %c0_i32_1 = arith.constant 0 : i32
    return %arg0, %c0_i32, %c0_i32_0 : i32, i32, i32
  }
  func.func @transform_3(%arg0: i32) -> (i32, i32, i32) {
    %c0_i32 = arith.constant 0 : i32
    %c0_i32_0 = arith.constant 0 : i32
    %c0_i32_1 = arith.constant 0 : i32
    return %arg0, %c0_i32, %c0_i32_0 : i32, i32, i32
  }
  func.func @transform_4(%arg0: i32) -> (i32, i32, i32) {
    %c0_i32 = arith.constant 0 : i32
    %c0_i32_0 = arith.constant 0 : i32
    %c0_i32_1 = arith.constant 0 : i32
    return %arg0, %c0_i32, %c0_i32_0 : i32, i32, i32
  }
  func.func @transform_5(%arg0: i32) -> (i32, i32, i32) {
    %c0_i32 = arith.constant 0 : i32
    %c0_i32_0 = arith.constant 0 : i32
    %c0_i32_1 = arith.constant 0 : i32
    return %arg0, %c0_i32, %c0_i32_0 : i32, i32, i32
  }
  func.func @transform_6(%arg0: i32) -> (i32, i32, i32) {
    %c0_i32 = arith.constant 0 : i32
    %c0_i32_0 = arith.constant 0 : i32
    %c0_i32_1 = arith.constant 0 : i32
    return %arg0, %c0_i32, %c0_i32_0 : i32, i32, i32
  }
  func.func @transform_7(%arg0: i32) -> (i32, i32, i32) {
    %c0_i32 = arith.constant 0 : i32
    %c0_i32_0 = arith.constant 0 : i32
    %c0_i32_1 = arith.constant 0 : i32
    return %arg0, %c0_i32, %c0_i32_0 : i32, i32, i32
  }
  func.func @transform_8(%arg0: i32) -> (i32, i32, i32) {
    %c0_i32 = arith.constant 0 : i32
    %c0_i32_0 = arith.constant 0 : i32
    %c0_i32_1 = arith.constant 0 : i32
    return %arg0, %c0_i32, %c0_i32_0 : i32, i32, i32
  }
  func.func @transform_9(%arg0: i32) -> (i32, i32, i32) {
    %c0_i32 = arith.constant 0 : i32
    %c0_i32_0 = arith.constant 0 : i32
    %c0_i32_1 = arith.constant 0 : i32
    return %arg0, %c0_i32, %c0_i32_0 : i32, i32, i32
  }
  func.func @transform_10(%arg0: i32) -> (i32, i32, i32) {
    %c0_i32 = arith.constant 0 : i32
    %c0_i32_0 = arith.constant 0 : i32
    %c0_i32_1 = arith.constant 0 : i32
    return %arg0, %c0_i32, %c0_i32_0 : i32, i32, i32
  }
  func.func @transform_11(%arg0: i32) -> (i32, i32, i32) {
    %c0_i32 = arith.constant 0 : i32
    %c0_i32_0 = arith.constant 0 : i32
    %c0_i32_1 = arith.constant 0 : i32
    return %arg0, %c0_i32, %c0_i32_0 : i32, i32, i32
  }
  func.func @transform_12(%arg0: i32) -> (i32, i32, i32) {
    %c0_i32 = arith.constant 0 : i32
    %c0_i32_0 = arith.constant 0 : i32
    %c0_i32_1 = arith.constant 0 : i32
    return %arg0, %c0_i32, %c0_i32_0 : i32, i32, i32
  }
  func.func @transform_13(%arg0: i32) -> (i32, i32) {
    %c0_i32 = arith.constant 0 : i32
    %c0_i32_0 = arith.constant 0 : i32
    %c0_i32_1 = arith.constant 0 : i32
    return %c0_i32, %c0_i32_0 : i32, i32
  }
}

</mosaic_0001>

<llo_original>
// kernel: tpu_custom_call.1
$region0: #{tpu_custom_call.1}
  #allocation0 [shape = 'u32[]', space=smem, size = 0x4, offset = 0x4, fixed_abs, tag = 'smem constant byte address 0x4 - core index']
  #allocation1 [shape = 'u32[144,128]{1,0:T(1,128)}', space=vmem, size = 0x12000, scoped, tag = 'internal scratch']
  %s0 = inlined_call_operand.hbm [shape: f32[16,32], index: 0, kind: input, shape index: {}]
  %s1 = inlined_call_operand.vmem [shape: f32[2,32,96], index: 1, kind: input, shape index: {}]
  %s2 = inlined_call_operand.vmem [shape: f32[2,1,96], index: 2, kind: input, shape index: {}]
  %s3 = inlined_call_operand.vmem [shape: f32[2,32,32], index: 3, kind: input, shape index: {}]
  %s4 = inlined_call_operand.vmem [shape: f32[2,1,32], index: 4, kind: input, shape index: {}]
  %s5 = inlined_call_operand.vmem [shape: f32[2,32,64], index: 5, kind: input, shape index: {}]
  %s6 = inlined_call_operand.vmem [shape: f32[2,1,64], index: 6, kind: input, shape index: {}]
  %s7 = inlined_call_operand.vmem [shape: f32[2,64,32], index: 7, kind: input, shape index: {}]
  %s8 = inlined_call_operand.vmem [shape: f32[2,1,32], index: 8, kind: input, shape index: {}]
  %s9 = inlined_call_operand.vmem [shape: f32[2,1,32], index: 9, kind: input, shape index: {}]
  %s10 = inlined_call_operand.vmem [shape: f32[2,1,32], index: 10, kind: input, shape index: {}]
  %s11 = inlined_call_operand.vmem [shape: f32[2,1,32], index: 11, kind: input, shape index: {}]
  %s12 = inlined_call_operand.vmem [shape: f32[2,1,32], index: 12, kind: input, shape index: {}]
  %s13 = inlined_call_operand.hbm [shape: f32[16,32], index: 13, kind: output, shape index: {}]
  %s14 = sld [smem:[#allocation0]]
  $region97: #{tpu_custom_call.1} parent=0
    _
  %s16 = ssub.s32 1, %s14
  %s17 = scalar_select 0, %s16, %s14
  $region1: #{tpu_custom_call.1} parent=0
    #allocation2 [shape = 'u8[8192]{0}', space=vmem, size = 0x2000, scoped, tag = 'input window, operand 0, single buffered']
    #allocation3 [shape = 's32[2]{0}', space=sflag, size = 0x8, scoped, tag = 'scoped memory for tpu_custom_call.1']
    #allocation4 [shape = 's32[2]{0}', space=sflag, size = 0x8, scoped, tag = 'scoped memory for tpu_custom_call.1']
    #allocation5 [shape = 'u8[8192]{0}', space=vmem, size = 0x2000, scoped, tag = 'output window, operand 0, single buffered']
    %18 = vsyncpa [#allocation3], 0
    %19 = vsyncpa [#allocation4], 0
    loop: start=0, step=1, limit=4
    $region2: #{tpu_custom_call.1} parent=1 // loop_pre_header
      _
    $region3: #{tpu_custom_call.1} parent=1 // loop_header
      %s21 = sphi 0, %s25
      %p22 = scmp.ge.s32.totalorder %s21, 4
      %s29 = sphi 0, %s29
      %s31 = sphi 0, %s29
      %s32 = sphi 0, %s31
      %s46 = sphi 0, %s32
      %s52 = sphi 0, %s54
      %s55 = sphi 0, %s52
      %s56 = sphi 0, %s55
      %s72 = sphi 0, %s56
      %s78 = sphi 0, %s80
      %s81 = sphi 0, %s78
      %s82 = sphi 0, %s81
      %s98 = sphi 0, %s82
      %s104 = sphi 0, %s106
      %s107 = sphi 0, %s104
      %s108 = sphi 0, %s107
      %s124 = sphi 0, %s108
      %s130 = sphi 0, %s132
      %s133 = sphi 0, %s130
      %s134 = sphi 0, %s133
      %s150 = sphi 0, %s134
      %s156 = sphi 0, %s158
      %s159 = sphi 0, %s156
      %s160 = sphi 0, %s159
      %s176 = sphi 0, %s160
      %s182 = sphi 0, %s184
      %s185 = sphi 0, %s182
      %s186 = sphi 0, %s185
      %s202 = sphi 0, %s186
      %s208 = sphi 0, %s210
      %s211 = sphi 0, %s208
      %s212 = sphi 0, %s211
      %s228 = sphi 0, %s212
      %s234 = sphi 0, %s236
      %s237 = sphi 0, %s234
      %s238 = sphi 0, %s237
      %s254 = sphi 0, %s238
      %s260 = sphi 0, %s262
      %s263 = sphi 0, %s260
      %s264 = sphi 0, %s263
      %s280 = sphi 0, %s264
      %s286 = sphi 0, %s288
      %s289 = sphi 0, %s286
      %s290 = sphi 0, %s289
      %s306 = sphi 0, %s290
      %s312 = sphi 0, %s314
      %s315 = sphi 0, %s312
      %s316 = sphi 0, %s315
      %s332 = sphi 0, %s316
      %s338 = sphi 0, %s340
      %s341 = sphi 0, %s338
      %s342 = sphi 0, %s341
      %s358 = sphi 0, %s342
      %s362 = sphi 0, %s362
      %s364 = sphi 0, %s362
      %s365 = sphi 0, %s364
      %s379 = sphi 0, %s365
    $region4: #{tpu_custom_call.1} parent=1 // loop_header_branch
      %24 = sbr.rel (%p22) target = $region8
    $region5: #{tpu_custom_call.1} parent=1 // loop_body
      %s26 = ssub.s32 %s21, 1
      %s27 = ssub.s32 %s21, 2
      %s28 = sadd.s32 %s21, 1
      %s30 = sadd.s32 %s29, 1
      %p33 = scmp.eq.s32.totalorder %s21, 1
      %p34 = scmp.ne.s32.totalorder %s29, %s31
      %p35 = scmp.eq.s32.totalorder %s21, 0
      %p36 = por %p34, %p35
      %p37 = scmp.ne.s32.totalorder %s29, %s31
      %p38 = scmp.eq.s32.totalorder %s26, 1
      %p39 = por %p37, %p38
      %p40 = scmp.ne.s32.totalorder %s31, %s32
      %p41 = scmp.eq.s32.totalorder %s26, 0
      %p42 = por %p40, %p41
      %p43 = scmp.ne.s32.totalorder %s31, %s32
      %p44 = scmp.eq.s32.totalorder %s27, 1
      %p45 = por %p43, %p44
      %p47 = scmp.ne.s32.totalorder %s32, %s46
      %p48 = scmp.eq.s32.totalorder %s27, 0
      %p49 = por %p47, %p48
      %s50 = ssub.s32 %s21, %s28
      %p51 = scmp.eq.s32.totalorder %s50, 0
      %s53 = sadd.s32 %s52, 1
      %s54 = scalar_select %p51, %s52, %s53
      %p57 = pneg %p51
      %p58 = scmp.eq.s32.totalorder %s21, 1
      %p59 = por %p57, %p58
      %p60 = scmp.ne.s32.totalorder %s52, %s55
      %p61 = scmp.eq.s32.totalorder %s21, 0
      %p62 = por %p60, %p61
      %p63 = scmp.ne.s32.totalorder %s52, %s55
      %p64 = scmp.eq.s32.totalorder %s26, 1
      %p65 = por %p63, %p64
      %p66 = scmp.ne.s32.totalorder %s55, %s56
      %p67 = scmp.eq.s32.totalorder %s26, 0
      %p68 = por %p66, %p67
      %p69 = scmp.ne.s32.totalorder %s55, %s56
      %p70 = scmp.eq.s32.totalorder %s27, 1
      %p71 = por %p69, %p70
      %p73 = scmp.ne.s32.totalorder %s56, %s72
      %p74 = scmp.eq.s32.totalorder %s27, 0
      %p75 = por %p73, %p74
      %s76 = ssub.s32 %s21, %s28
      %p77 = scmp.eq.s32.totalorder %s76, 0
      %s79 = sadd.s32 %s78, 1
      %s80 = scalar_select %p77, %s78, %s79
      %p83 = pneg %p77
      %p84 = scmp.eq.s32.totalorder %s21, 1
      %p85 = por %p83, %p84
      %p86 = scmp.ne.s32.totalorder %s78, %s81
      %p87 = scmp.eq.s32.totalorder %s21, 0
      %p88 = por %p86, %p87
      %p89 = scmp.ne.s32.totalorder %s78, %s81
      %p90 = scmp.eq.s32.totalorder %s26, 1
      %p91 = por %p89, %p90
      %p92 = scmp.ne.s32.totalorder %s81, %s82
      %p93 = scmp.eq.s32.totalorder %s26, 0
      %p94 = por %p92, %p93
      %p95 = scmp.ne.s32.totalorder %s81, %s82
      %p96 = scmp.eq.s32.totalorder %s27, 1
      %p97 = por %p95, %p96
      %p99 = scmp.ne.s32.totalorder %s82, %s98
      %p100 = scmp.eq.s32.totalorder %s27, 0
      %p101 = por %p99, %p100
      %s102 = ssub.s32 %s21, %s28
      %p103 = scmp.eq.s32.totalorder %s102, 0
      %s105 = sadd.s32 %s104, 1
      %s106 = scalar_select %p103, %s104, %s105
      %p109 = pneg %p103
      %p110 = scmp.eq.s32.totalorder %s21, 1
      %p111 = por %p109, %p110
      %p112 = scmp.ne.s32.totalorder %s104, %s107
      %p113 = scmp.eq.s32.totalorder %s21, 0
      %p114 = por %p112, %p113
      %p115 = scmp.ne.s32.totalorder %s104, %s107
      %p116 = scmp.eq.s32.totalorder %s26, 1
      %p117 = por %p115, %p116
      %p118 = scmp.ne.s32.totalorder %s107, %s108
      %p119 = scmp.eq.s32.totalorder %s26, 0
      %p120 = por %p118, %p119
      %p121 = scmp.ne.s32.totalorder %s107, %s108
      %p122 = scmp.eq.s32.totalorder %s27, 1
      %p123 = por %p121, %p122
      %p125 = scmp.ne.s32.totalorder %s108, %s124
      %p126 = scmp.eq.s32.totalorder %s27, 0
      %p127 = por %p125, %p126
      %s128 = ssub.s32 %s21, %s28
      %p129 = scmp.eq.s32.totalorder %s128, 0
      %s131 = sadd.s32 %s130, 1
      %s132 = scalar_select %p129, %s130, %s131
      %p135 = pneg %p129
      %p136 = scmp.eq.s32.totalorder %s21, 1
      %p137 = por %p135, %p136
      %p138 = scmp.ne.s32.totalorder %s130, %s133
      %p139 = scmp.eq.s32.totalorder %s21, 0
      %p140 = por %p138, %p139
      %p141 = scmp.ne.s32.totalorder %s130, %s133
      %p142 = scmp.eq.s32.totalorder %s26, 1
      %p143 = por %p141, %p142
      %p144 = scmp.ne.s32.totalorder %s133, %s134
      %p145 = scmp.eq.s32.totalorder %s26, 0
      %p146 = por %p144, %p145
      %p147 = scmp.ne.s32.totalorder %s133, %s134
      %p148 = scmp.eq.s32.totalorder %s27, 1
      %p149 = por %p147, %p148
      %p151 = scmp.ne.s32.totalorder %s134, %s150
      %p152 = scmp.eq.s32.totalorder %s27, 0
      %p153 = por %p151, %p152
      %s154 = ssub.s32 %s21, %s28
      %p155 = scmp.eq.s32.totalorder %s154, 0
      %s157 = sadd.s32 %s156, 1
      %s158 = scalar_select %p155, %s156, %s157
      %p161 = pneg %p155
      %p162 = scmp.eq.s32.totalorder %s21, 1
      %p163 = por %p161, %p162
      %p164 = scmp.ne.s32.totalorder %s156, %s159
      %p165 = scmp.eq.s32.totalorder %s21, 0
      %p166 = por %p164, %p165
      %p167 = scmp.ne.s32.totalorder %s156, %s159
      %p168 = scmp.eq.s32.totalorder %s26, 1
      %p169 = por %p167, %p168
      %p170 = scmp.ne.s32.totalorder %s159, %s160
      %p171 = scmp.eq.s32.totalorder %s26, 0
      %p172 = por %p170, %p171
      %p173 = scmp.ne.s32.totalorder %s159, %s160
      %p174 = scmp.eq.s32.totalorder %s27, 1
      %p175 = por %p173, %p174
      %p177 = scmp.ne.s32.totalorder %s160, %s176
      %p178 = scmp.eq.s32.totalorder %s27, 0
      %p179 = por %p177, %p178
      %s180 = ssub.s32 %s21, %s28
      %p181 = scmp.eq.s32.totalorder %s180, 0
      %s183 = sadd.s32 %s182, 1
      %s184 = scalar_select %p181, %s182, %s183
      %p187 = pneg %p181
      %p188 = scmp.eq.s32.totalorder %s21, 1
      %p189 = por %p187, %p188
      %p190 = scmp.ne.s32.totalorder %s182, %s185
      %p191 = scmp.eq.s32.totalorder %s21, 0
      %p192 = por %p190, %p191
      %p193 = scmp.ne.s32.totalorder %s182, %s185
      %p194 = scmp.eq.s32.totalorder %s26, 1
      %p195 = por %p193, %p194
      %p196 = scmp.ne.s32.totalorder %s185, %s186
      %p197 = scmp.eq.s32.totalorder %s26, 0
      %p198 = por %p196, %p197
      %p199 = scmp.ne.s32.totalorder %s185, %s186
      %p200 = scmp.eq.s32.totalorder %s27, 1
      %p201 = por %p199, %p200
      %p203 = scmp.ne.s32.totalorder %s186, %s202
      %p204 = scmp.eq.s32.totalorder %s27, 0
      %p205 = por %p203, %p204
      %s206 = ssub.s32 %s21, %s28
      %p207 = scmp.eq.s32.totalorder %s206, 0
      %s209 = sadd.s32 %s208, 1
      %s210 = scalar_select %p207, %s208, %s209
      %p213 = pneg %p207
      %p214 = scmp.eq.s32.totalorder %s21, 1
      %p215 = por %p213, %p214
      %p216 = scmp.ne.s32.totalorder %s208, %s211
      %p217 = scmp.eq.s32.totalorder %s21, 0
      %p218 = por %p216, %p217
      %p219 = scmp.ne.s32.totalorder %s208, %s211
      %p220 = scmp.eq.s32.totalorder %s26, 1
      %p221 = por %p219, %p220
      %p222 = scmp.ne.s32.totalorder %s211, %s212
      %p223 = scmp.eq.s32.totalorder %s26, 0
      %p224 = por %p222, %p223
      %p225 = scmp.ne.s32.totalorder %s211, %s212
      %p226 = scmp.eq.s32.totalorder %s27, 1
      %p227 = por %p225, %p226
      %p229 = scmp.ne.s32.totalorder %s212, %s228
      %p230 = scmp.eq.s32.totalorder %s27, 0
      %p231 = por %p229, %p230
      %s232 = ssub.s32 %s21, %s28
      %p233 = scmp.eq.s32.totalorder %s232, 0
      %s235 = sadd.s32 %s234, 1
      %s236 = scalar_select %p233, %s234, %s235
      %p239 = pneg %p233
      %p240 = scmp.eq.s32.totalorder %s21, 1
      %p241 = por %p239, %p240
      %p242 = scmp.ne.s32.totalorder %s234, %s237
      %p243 = scmp.eq.s32.totalorder %s21, 0
      %p244 = por %p242, %p243
      %p245 = scmp.ne.s32.totalorder %s234, %s237
      %p246 = scmp.eq.s32.totalorder %s26, 1
      %p247 = por %p245, %p246
      %p248 = scmp.ne.s32.totalorder %s237, %s238
      %p249 = scmp.eq.s32.totalorder %s26, 0
      %p250 = por %p248, %p249
      %p251 = scmp.ne.s32.totalorder %s237, %s238
      %p252 = scmp.eq.s32.totalorder %s27, 1
      %p253 = por %p251, %p252
      %p255 = scmp.ne.s32.totalorder %s238, %s254
      %p256 = scmp.eq.s32.totalorder %s27, 0
      %p257 = por %p255, %p256
      %s258 = ssub.s32 %s21, %s28
      %p259 = scmp.eq.s32.totalorder %s258, 0
      %s261 = sadd.s32 %s260, 1
      %s262 = scalar_select %p259, %s260, %s261
      %p265 = pneg %p259
      %p266 = scmp.eq.s32.totalorder %s21, 1
      %p267 = por %p265, %p266
      %p268 = scmp.ne.s32.totalorder %s260, %s263
      %p269 = scmp.eq.s32.totalorder %s21, 0
      %p270 = por %p268, %p269
      %p271 = scmp.ne.s32.totalorder %s260, %s263
      %p272 = scmp.eq.s32.totalorder %s26, 1
      %p273 = por %p271, %p272
      %p274 = scmp.ne.s32.totalorder %s263, %s264
      %p275 = scmp.eq.s32.totalorder %s26, 0
      %p276 = por %p274, %p275
      %p277 = scmp.ne.s32.totalorder %s263, %s264
      %p278 = scmp.eq.s32.totalorder %s27, 1
      %p279 = por %p277, %p278
      %p281 = scmp.ne.s32.totalorder %s264, %s280
      %p282 = scmp.eq.s32.totalorder %s27, 0
      %p283 = por %p281, %p282
      %s284 = ssub.s32 %s21, %s28
      %p285 = scmp.eq.s32.totalorder %s284, 0
      %s287 = sadd.s32 %s286, 1
      %s288 = scalar_select %p285, %s286, %s287
      %p291 = pneg %p285
      %p292 = scmp.eq.s32.totalorder %s21, 1
      %p293 = por %p291, %p292
      %p294 = scmp.ne.s32.totalorder %s286, %s289
      %p295 = scmp.eq.s32.totalorder %s21, 0
      %p296 = por %p294, %p295
      %p297 = scmp.ne.s32.totalorder %s286, %s289
      %p298 = scmp.eq.s32.totalorder %s26, 1
      %p299 = por %p297, %p298
      %p300 = scmp.ne.s32.totalorder %s289, %s290
      %p301 = scmp.eq.s32.totalorder %s26, 0
      %p302 = por %p300, %p301
      %p303 = scmp.ne.s32.totalorder %s289, %s290
      %p304 = scmp.eq.s32.totalorder %s27, 1
      %p305 = por %p303, %p304
      %p307 = scmp.ne.s32.totalorder %s290, %s306
      %p308 = scmp.eq.s32.totalorder %s27, 0
      %p309 = por %p307, %p308
      %s310 = ssub.s32 %s21, %s28
      %p311 = scmp.eq.s32.totalorder %s310, 0
      %s313 = sadd.s32 %s312, 1
      %s314 = scalar_select %p311, %s312, %s313
      %p317 = pneg %p311
      %p318 = scmp.eq.s32.totalorder %s21, 1
      %p319 = por %p317, %p318
      %p320 = scmp.ne.s32.totalorder %s312, %s315
      %p321 = scmp.eq.s32.totalorder %s21, 0
      %p322 = por %p320, %p321
      %p323 = scmp.ne.s32.totalorder %s312, %s315
      %p324 = scmp.eq.s32.totalorder %s26, 1
      %p325 = por %p323, %p324
      %p326 = scmp.ne.s32.totalorder %s315, %s316
      %p327 = scmp.eq.s32.totalorder %s26, 0
      %p328 = por %p326, %p327
      %p329 = scmp.ne.s32.totalorder %s315, %s316
      %p330 = scmp.eq.s32.totalorder %s27, 1
      %p331 = por %p329, %p330
      %p333 = scmp.ne.s32.totalorder %s316, %s332
      %p334 = scmp.eq.s32.totalorder %s27, 0
      %p335 = por %p333, %p334
      %s336 = ssub.s32 %s21, %s28
      %p337 = scmp.eq.s32.totalorder %s336, 0
      %s339 = sadd.s32 %s338, 1
      %s340 = scalar_select %p337, %s338, %s339
      %p343 = pneg %p337
      %p344 = scmp.eq.s32.totalorder %s21, 1
      %p345 = por %p343, %p344
      %p346 = scmp.ne.s32.totalorder %s338, %s341
      %p347 = scmp.eq.s32.totalorder %s21, 0
      %p348 = por %p346, %p347
      %p349 = scmp.ne.s32.totalorder %s338, %s341
      %p350 = scmp.eq.s32.totalorder %s26, 1
      %p351 = por %p349, %p350
      %p352 = scmp.ne.s32.totalorder %s341, %s342
      %p353 = scmp.eq.s32.totalorder %s26, 0
      %p354 = por %p352, %p353
      %p355 = scmp.ne.s32.totalorder %s341, %s342
      %p356 = scmp.eq.s32.totalorder %s27, 1
      %p357 = por %p355, %p356
      %p359 = scmp.ne.s32.totalorder %s342, %s358
      %p360 = scmp.eq.s32.totalorder %s27, 0
      %p361 = por %p359, %p360
      %s363 = sadd.s32 %s362, 1
      %p366 = scmp.eq.s32.totalorder %s21, 1
      %p367 = scmp.ne.s32.totalorder %s362, %s364
      %p368 = scmp.eq.s32.totalorder %s21, 0
      %p369 = por %p367, %p368
      %p370 = scmp.ne.s32.totalorder %s362, %s364
      %p371 = scmp.eq.s32.totalorder %s26, 1
      %p372 = por %p370, %p371
      %p373 = scmp.ne.s32.totalorder %s364, %s365
      %p374 = scmp.eq.s32.totalorder %s26, 0
      %p375 = por %p373, %p374
      %p376 = scmp.ne.s32.totalorder %s364, %s365
      %p377 = scmp.eq.s32.totalorder %s27, 1
      %p378 = por %p376, %p377
      %p380 = scmp.ne.s32.totalorder %s365, %s379
      %p381 = scmp.eq.s32.totalorder %s27, 0
      %p382 = por %p380, %p381
      %p383 = scmp.le.s32.totalorder 1, %s21
      %p384 = scmp.lt.s32.totalorder %s21, 3
      %p385 = pnand %p383, %p384
      %p386 = pneg %p385
      // Predicated region
      $region9: #{tpu_custom_call.1} parent=5 // pred_check
        _
      $region10: #{tpu_custom_call.1} parent=5 // pred_check_branch
        %388 = sbr.rel (%p385) target = $region12
      $region11: #{tpu_custom_call.1} parent=5 // pred_region
        %s389 = ssub.s32 %s21, 1
        // Predicated region
        $region13: #{tpu_custom_call.1} parent=11 // pred_check
          %p390 = pneg %p42
        $region14: #{tpu_custom_call.1} parent=11 // pred_check_branch
          %392 = sbr.rel (%p390) target = $region16
        $region15: #{tpu_custom_call.1} parent=11 // pred_region
          %s394 = ssub.s32 256, 256
          %395 = vsyncadd [#allocation3], %s394
          %s396 = sshll.u32 [#allocation2], 4
          %s397 = int_to_ptr.vmem [resolvable:$true] %s396
          %402 = dma.hbm_to_vmem [thread:$0]  %s0, 256, %s397, [#allocation3], 128, 128, 8
        $region16: #{tpu_custom_call.1} parent=11 // pred_fallthru
          _
      $region12: #{tpu_custom_call.1} parent=5 // pred_fallthru
        _
      %p403 = scmp.lt.s32.totalorder %s21, 2
      // Predicated region
      $region17: #{tpu_custom_call.1} parent=5 // pred_check
        %p404 = pneg %p403
      $region18: #{tpu_custom_call.1} parent=5 // pred_check_branch
        %406 = sbr.rel (%p404) target = $region20
      $region19: #{tpu_custom_call.1} parent=5 // pred_region
        // Predicated region
        $region21: #{tpu_custom_call.1} parent=19 // pred_check
          %p407 = pneg %p62
        $region22: #{tpu_custom_call.1} parent=19 // pred_check_branch
          %409 = sbr.rel (%p407) target = $region24
        $region23: #{tpu_custom_call.1} parent=19 // pred_region
          %p410 = scmp.lt.s32.totalorder %s21, 1
          %s411 = scalar_select %p410, %s21, 1
          %s412 = smul.addr %s411, 4
          %s413 = smul.addr %s412, 8
          %s414 = scalar_lea.vmem %s1, %s413
        $region24: #{tpu_custom_call.1} parent=19 // pred_fallthru
          _
        // Predicated region
        $region25: #{tpu_custom_call.1} parent=19 // pred_check
          %p415 = pneg %p88
        $region26: #{tpu_custom_call.1} parent=19 // pred_check_branch
          %417 = sbr.rel (%p415) target = $region28
        $region27: #{tpu_custom_call.1} parent=19 // pred_region
          %p418 = scmp.lt.s32.totalorder %s21, 1
          %s419 = scalar_select %p418, %s21, 1
          %s420 = scalar_lea.vmem %s2, %s419
        $region28: #{tpu_custom_call.1} parent=19 // pred_fallthru
          _
        // Predicated region
        $region29: #{tpu_custom_call.1} parent=19 // pred_check
          %p421 = pneg %p114
        $region30: #{tpu_custom_call.1} parent=19 // pred_check_branch
          %423 = sbr.rel (%p421) target = $region32
        $region31: #{tpu_custom_call.1} parent=19 // pred_region
          %p424 = scmp.lt.s32.totalorder %s21, 1
          %s425 = scalar_select %p424, %s21, 1
          %s426 = smul.addr %s425, 4
          %s427 = smul.addr %s426, 8
          %s428 = scalar_lea.vmem %s3, %s427
        $region32: #{tpu_custom_call.1} parent=19 // pred_fallthru
          _
        // Predicated region
        $region33: #{tpu_custom_call.1} parent=19 // pred_check
          %p429 = pneg %p140
        $region34: #{tpu_custom_call.1} parent=19 // pred_check_branch
          %431 = sbr.rel (%p429) target = $region36
        $region35: #{tpu_custom_call.1} parent=19 // pred_region
          %p432 = scmp.lt.s32.totalorder %s21, 1
          %s433 = scalar_select %p432, %s21, 1
          %s434 = scalar_lea.vmem %s4, %s433
        $region36: #{tpu_custom_call.1} parent=19 // pred_fallthru
          _
        // Predicated region
        $region37: #{tpu_custom_call.1} parent=19 // pred_check
          %p435 = pneg %p166
        $region38: #{tpu_custom_call.1} parent=19 // pred_check_branch
          %437 = sbr.rel (%p435) target = $region40
        $region39: #{tpu_custom_call.1} parent=19 // pred_region
          %p438 = scmp.lt.s32.totalorder %s21, 1
          %s439 = scalar_select %p438, %s21, 1
          %s440 = smul.addr %s439, 4
          %s441 = smul.addr %s440, 8
          %s442 = scalar_lea.vmem %s5, %s441
        $region40: #{tpu_custom_call.1} parent=19 // pred_fallthru
          _
        // Predicated region
        $region41: #{tpu_custom_call.1} parent=19 // pred_check
          %p443 = pneg %p192
        $region42: #{tpu_custom_call.1} parent=19 // pred_check_branch
          %445 = sbr.rel (%p443) target = $region44
        $region43: #{tpu_custom_call.1} parent=19 // pred_region
          %p446 = scmp.lt.s32.totalorder %s21, 1
          %s447 = scalar_select %p446, %s21, 1
          %s448 = scalar_lea.vmem %s6, %s447
        $region44: #{tpu_custom_call.1} parent=19 // pred_fallthru
          _
        // Predicated region
        $region45: #{tpu_custom_call.1} parent=19 // pred_check
          %p449 = pneg %p218
        $region46: #{tpu_custom_call.1} parent=19 // pred_check_branch
          %451 = sbr.rel (%p449) target = $region48
        $region47: #{tpu_custom_call.1} parent=19 // pred_region
          %p452 = scmp.lt.s32.totalorder %s21, 1
          %s453 = scalar_select %p452, %s21, 1
          %s454 = smul.addr %s453, 8
          %s455 = smul.addr %s454, 8
          %s456 = scalar_lea.vmem %s7, %s455
        $region48: #{tpu_custom_call.1} parent=19 // pred_fallthru
          _
        // Predicated region
        $region49: #{tpu_custom_call.1} parent=19 // pred_check
          %p457 = pneg %p244
        $region50: #{tpu_custom_call.1} parent=19 // pred_check_branch
          %459 = sbr.rel (%p457) target = $region52
        $region51: #{tpu_custom_call.1} parent=19 // pred_region
          %p460 = scmp.lt.s32.totalorder %s21, 1
          %s461 = scalar_select %p460, %s21, 1
          %s462 = scalar_lea.vmem %s8, %s461
        $region52: #{tpu_custom_call.1} parent=19 // pred_fallthru
          _
        // Predicated region
        $region53: #{tpu_custom_call.1} parent=19 // pred_check
          %p463 = pneg %p270
        $region54: #{tpu_custom_call.1} parent=19 // pred_check_branch
          %465 = sbr.rel (%p463) target = $region56
        $region55: #{tpu_custom_call.1} parent=19 // pred_region
          %p466 = scmp.lt.s32.totalorder %s21, 1
          %s467 = scalar_select %p466, %s21, 1
          %s468 = scalar_lea.vmem %s9, %s467
        $region56: #{tpu_custom_call.1} parent=19 // pred_fallthru
          _
        // Predicated region
        $region57: #{tpu_custom_call.1} parent=19 // pred_check
          %p469 = pneg %p296
        $region58: #{tpu_custom_call.1} parent=19 // pred_check_branch
          %471 = sbr.rel (%p469) target = $region60
        $region59: #{tpu_custom_call.1} parent=19 // pred_region
          %p472 = scmp.lt.s32.totalorder %s21, 1
          %s473 = scalar_select %p472, %s21, 1
          %s474 = scalar_lea.vmem %s10, %s473
        $region60: #{tpu_custom_call.1} parent=19 // pred_fallthru
          _
        // Predicated region
        $region61: #{tpu_custom_call.1} parent=19 // pred_check
          %p475 = pneg %p322
        $region62: #{tpu_custom_call.1} parent=19 // pred_check_branch
          %477 = sbr.rel (%p475) target = $region64
        $region63: #{tpu_custom_call.1} parent=19 // pred_region
          %p478 = scmp.lt.s32.totalorder %s21, 1
          %s479 = scalar_select %p478, %s21, 1
          %s480 = scalar_lea.vmem %s11, %s479
        $region64: #{tpu_custom_call.1} parent=19 // pred_fallthru
          _
        // Predicated region
        $region65: #{tpu_custom_call.1} parent=19 // pred_check
          %p481 = pneg %p348
        $region66: #{tpu_custom_call.1} parent=19 // pred_check_branch
          %483 = sbr.rel (%p481) target = $region68
        $region67: #{tpu_custom_call.1} parent=19 // pred_region
          %p484 = scmp.lt.s32.totalorder %s21, 1
          %s485 = scalar_select %p484, %s21, 1
          %s486 = scalar_lea.vmem %s12, %s485
        $region68: #{tpu_custom_call.1} parent=19 // pred_fallthru
          _
      $region20: #{tpu_custom_call.1} parent=5 // pred_fallthru
        _
      %p487 = scmp.le.s32.totalorder 1, %s21
      %p488 = scmp.lt.s32.totalorder %s21, 3
      %p489 = pnand %p487, %p488
      %p490 = pneg %p489
      // Predicated region
      $region69: #{tpu_custom_call.1} parent=5 // pred_check
        _
      $region70: #{tpu_custom_call.1} parent=5 // pred_check_branch
        %492 = sbr.rel (%p489) target = $region72
      $region71: #{tpu_custom_call.1} parent=5 // pred_region
        %s493 = ssub.s32 %s21, 1
        // Predicated region
        $region73: #{tpu_custom_call.1} parent=71 // pred_check
          %p494 = pneg %p42
        $region74: #{tpu_custom_call.1} parent=71 // pred_check_branch
          %496 = sbr.rel (%p494) target = $region76
        $region75: #{tpu_custom_call.1} parent=71 // pred_region
          %497 = dma.done [#allocation3], 256
        $region76: #{tpu_custom_call.1} parent=71 // pred_fallthru
          _
        %p498 = pneg %p42
        %p499 = pneg %p39
        %p500 = scmp.lt.s32.totalorder %s26, 1
        %s501 = scalar_select %p500, %s26, 1
        %s502 = smul.addr %s501, 4
        %s503 = smul.addr %s502, 8
        %s504 = scalar_lea.vmem %s1, %s503
        %p505 = pneg %p68
        %p506 = pneg %p65
        %p507 = scmp.lt.s32.totalorder %s26, 1
        %s508 = scalar_select %p507, %s26, 1
        %s509 = scalar_lea.vmem %s2, %s508
        %p510 = pneg %p94
        %p511 = pneg %p91
        %p512 = scmp.lt.s32.totalorder %s26, 1
        %s513 = scalar_select %p512, %s26, 1
        %s514 = smul.addr %s513, 4
        %s515 = smul.addr %s514, 8
        %s516 = scalar_lea.vmem %s3, %s515
        %p517 = pneg %p120
        %p518 = pneg %p117
        %p519 = scmp.lt.s32.totalorder %s26, 1
        %s520 = scalar_select %p519, %s26, 1
        %s521 = scalar_lea.vmem %s4, %s520
        %p522 = pneg %p146
        %p523 = pneg %p143
        %p524 = scmp.lt.s32.totalorder %s26, 1
        %s525 = scalar_select %p524, %s26, 1
        %s526 = smul.addr %s525, 4
        %s527 = smul.addr %s526, 8
        %s528 = scalar_lea.vmem %s5, %s527
        %p529 = pneg %p172
        %p530 = pneg %p169
        %p531 = scmp.lt.s32.totalorder %s26, 1
        %s532 = scalar_select %p531, %s26, 1
        %s533 = scalar_lea.vmem %s6, %s532
        %p534 = pneg %p198
        %p535 = pneg %p195
        %p536 = scmp.lt.s32.totalorder %s26, 1
        %s537 = scalar_select %p536, %s26, 1
        %s538 = smul.addr %s537, 8
        %s539 = smul.addr %s538, 8
        %s540 = scalar_lea.vmem %s7, %s539
        %p541 = pneg %p224
        %p542 = pneg %p221
        %p543 = scmp.lt.s32.totalorder %s26, 1
        %s544 = scalar_select %p543, %s26, 1
        %s545 = scalar_lea.vmem %s8, %s544
        %p546 = pneg %p250
        %p547 = pneg %p247
        %p548 = scmp.lt.s32.totalorder %s26, 1
        %s549 = scalar_select %p548, %s26, 1
        %s550 = scalar_lea.vmem %s9, %s549
        %p551 = pneg %p276
        %p552 = pneg %p273
        %p553 = scmp.lt.s32.totalorder %s26, 1
        %s554 = scalar_select %p553, %s26, 1
        %s555 = scalar_lea.vmem %s10, %s554
        %p556 = pneg %p302
        %p557 = pneg %p299
        %p558 = scmp.lt.s32.totalorder %s26, 1
        %s559 = scalar_select %p558, %s26, 1
        %s560 = scalar_lea.vmem %s11, %s559
        %p561 = pneg %p328
        %p562 = pneg %p325
        %p563 = scmp.lt.s32.totalorder %s26, 1
        %s564 = scalar_select %p563, %s26, 1
        %s565 = scalar_lea.vmem %s12, %s564
        %p566 = pneg %p354
        %p567 = pneg %p351
        %p568 = pneg %p375
        %p569 = pneg %p372
        %p570 = scmp.lt.s32.totalorder %s26, 1
        %s571 = scalar_select %p570, %s26, 1
        %s572 = smul.addr %s571, 4
        %s573 = smul.addr %s572, 8
        %s574 = scalar_lea.vmem %s1, %s573
        %p575 = scmp.lt.s32.totalorder %s26, 1
        %s576 = scalar_select %p575, %s26, 1
        %s577 = scalar_lea.vmem %s2, %s576
        %p578 = scmp.lt.s32.totalorder %s26, 1
        %s579 = scalar_select %p578, %s26, 1
        %s580 = smul.addr %s579, 4
        %s581 = smul.addr %s580, 8
        %s582 = scalar_lea.vmem %s3, %s581
        %p583 = scmp.lt.s32.totalorder %s26, 1
        %s584 = scalar_select %p583, %s26, 1
        %s585 = scalar_lea.vmem %s4, %s584
        %p586 = scmp.lt.s32.totalorder %s26, 1
        %s587 = scalar_select %p586, %s26, 1
        %s588 = smul.addr %s587, 4
        %s589 = smul.addr %s588, 8
        %s590 = scalar_lea.vmem %s5, %s589
        %p591 = scmp.lt.s32.totalorder %s26, 1
        %s592 = scalar_select %p591, %s26, 1
        %s593 = scalar_lea.vmem %s6, %s592
        %p594 = scmp.lt.s32.totalorder %s26, 1
        %s595 = scalar_select %p594, %s26, 1
        %s596 = smul.addr %s595, 8
        %s597 = smul.addr %s596, 8
        %s598 = scalar_lea.vmem %s7, %s597
        %p599 = scmp.lt.s32.totalorder %s26, 1
        %s600 = scalar_select %p599, %s26, 1
        %s601 = scalar_lea.vmem %s8, %s600
        %p602 = scmp.lt.s32.totalorder %s26, 1
        %s603 = scalar_select %p602, %s26, 1
        %s604 = scalar_lea.vmem %s9, %s603
        %p605 = scmp.lt.s32.totalorder %s26, 1
        %s606 = scalar_select %p605, %s26, 1
        %s607 = scalar_lea.vmem %s10, %s606
        %p608 = scmp.lt.s32.totalorder %s26, 1
        %s609 = scalar_select %p608, %s26, 1
        %s610 = scalar_lea.vmem %s11, %s609
        %p611 = scmp.lt.s32.totalorder %s26, 1
        %s612 = scalar_select %p611, %s26, 1
        %s613 = scalar_lea.vmem %s12, %s612
        %p614 = scmp.eq.s32.totalorder %s26, 0
        // Predicated region
        $region77: #{tpu_custom_call.1} parent=71 // pred_check
          %p615 = pneg %p614
        $region78: #{tpu_custom_call.1} parent=71 // pred_check_branch
          %617 = sbr.rel (%p615) target = $region80
        $region79: #{tpu_custom_call.1} parent=71 // pred_region
          %v618 = vld [vmem:[#allocation2] sm:$0xff]
          %v619 = vld [vmem:[#allocation2 + $0x8] sm:$0xff]
          %vm620 = vcmask 261120
          %621 = vst.msk [vmem:[#allocation5] sm:$0xff] %vm620, %v618
          %622 = vst.msk [vmem:[#allocation5 + $0x8] sm:$0xff] %vm620, %v619
        $region80: #{tpu_custom_call.1} parent=71 // pred_fallthru
          _
        %v623 = vld [vmem:[#allocation5] sm:$0xff]
        %v624 = vld [vmem:[#allocation5 + $0x8] sm:$0xff]
        %v625 = vld [vmem:[%s574] sm:$0xff]
        %v626 = vld [vmem:[%s574 + $0x8] sm:$0xff]
        %v627 = vld [vmem:[%s574 + $0x10] sm:$0xff]
        %v628 = vld [vmem:[%s574 + $0x18] sm:$0xff]
        %v629 = vld [vmem:[%s577] sm:$0x1]
        %v631 = vlaneseq
        %v632 = vshrl.u32 %v631, 7
        %v633 = vsub.s32 0, %v632
        %v634 = vrot.slane %v629, %v633
        %vm636 = vcmask 261120
        %v638 = vsel %vm636, %v623, 0
        %v641 = vsel %vm636, %v624, 0
        %643 = vmatprep.subr.mxu0 0.0
        %644 = vmatpush1.msra.mxu0 %v625
        %645 = vmatprep.subr.mxu0 0.0
        %646 = vmatpush1.msra.mxu0 %v626
        %647 = vmatprep.subr.mxu0 0.0
        %648 = vmatpush1.msra.mxu0 %v627
        %649 = vmatprep.subr.mxu0 0.0
        %650 = vmatpush1.msra.mxu0 %v628
        %651 = vmatprep.subr.mxu0 0.0
        %652 = vmatpush1.msra.mxu0 0.0
        %653 = vmatprep.subr.mxu0 0.0
        %654 = vmatpush1.msra.mxu0 0.0
        %655 = vmatprep.subr.mxu0 0.0
        %656 = vmatpush1.msra.mxu0 0.0
        %657 = vmatprep.subr.mxu0 0.0
        %658 = vmatpush1.msra.mxu0 0.0
        %659 = vmatprep.subr.mxu0 0.0
        %660 = vmatpush1.msra.mxu0 0.0
        %661 = vmatprep.subr.mxu0 0.0
        %662 = vmatpush1.msra.mxu0 0.0
        %663 = vmatprep.subr.mxu0 0.0
        %664 = vmatpush1.msra.mxu0 0.0
        %665 = vmatprep.subr.mxu0 0.0
        %666 = vmatpush1.msra.mxu0 0.0
        %667 = vmatprep.subr.mxu0 0.0
        %668 = vmatpush1.msra.mxu0 0.0
        %669 = vmatprep.subr.mxu0 0.0
        %670 = vmatpush1.msra.mxu0 0.0
        %671 = vmatprep.subr.mxu0 0.0
        %672 = vmatpush1.msra.mxu0 0.0
        %673 = vmatprep.subr.mxu0 0.0
        %674 = vmatpush1.msra.mxu0 0.0
        %675 = vmatprep.subr.mxu0 0.0
        %676 = vmatpush1.msra.mxu0 0.0
        %677 = vmatprep.subr.mxu0 0.0
        %678 = vmatpush1.msra.mxu0 0.0
        %679 = vmatprep.subr.mxu0 0.0
        %680 = vmatpush1.msra.mxu0 0.0
        %681 = vmatprep.subr.mxu0 0.0
        %682 = vmatpush1.msra.mxu0 0.0
        %683 = vmatprep.subr.mxu0 0.0
        %684 = vmatpush1.msra.mxu0 0.0
        %685 = vmatprep.subr.mxu0 0.0
        %686 = vmatpush1.msra.mxu0 0.0
        %687 = vmatprep.subr.mxu0 0.0
        %688 = vmatpush1.msra.mxu0 0.0
        %689 = vmatprep.subr.mxu0 0.0
        %690 = vmatpush1.msra.mxu0 0.0
        %691 = vmatprep.subr.mxu0 0.0
        %692 = vmatpush1.msra.mxu0 0.0
        %693 = vmatprep.subr.mxu0 0.0
        %694 = vmatpush1.msra.mxu0 0.0
        %695 = vmatprep.subr.mxu0 0.0
        %696 = vmatpush1.msra.mxu0 0.0
        %697 = vmatprep.subr.mxu0 0.0
        %698 = vmatpush1.msra.mxu0 0.0
        %699 = vmatprep.subr.mxu0 0.0
        %700 = vmatpush1.msra.mxu0 0.0
        %701 = vmatprep.subr.mxu0 0.0
        %702 = vmatpush1.msra.mxu0 0.0
        %703 = vmatprep.subr.mxu0 0.0
        %704 = vmatpush1.msra.mxu0 0.0
        %705 = vmatprep.subr.mxu0 0.0
        %706 = vmatpush1.msra.mxu0 0.0
        %707 = vmatprep.mubr.f32.mxu0 0.0
        %708 = vmatmul.mubr.f32.gmra.mrb[0].mxu0 %v638
        %v709 = vpop.f32.mrb[0].mxu0
        %v710 = vadd.f32 %v634, %v709
        %v711 = vpop.f32.mrb[0].mxu0
        %712 = vmatprep.mubr.f32.mxu0 0.0
        %713 = vmatmul.mubr.f32.gmra.mrb[0].mxu0 %v641
        %v714 = vpop.f32.mrb[0].mxu0
        %v715 = vadd.f32 %v634, %v714
        %v716 = vpop.f32.mrb[0].mxu0
        %717 = vdwg.mxu0
        %720 = vrot.lane.b32.xlu0 %v710, 120
        %v721 = vpop.permute.xlu0 %720
        %722 = vrot.lane.b32.xlu0 %v715, 120
        %v723 = vpop.permute.xlu0 %722
        %724 = vrot.lane.b32.xlu0 %v710, 112
        %v725 = vpop.permute.xlu0 %724
        %726 = vrot.lane.b32.xlu0 %v715, 112
        %v727 = vpop.permute.xlu0 %726
        %728 = vrot.lane.b32.xlu0 %v710, 104
        %v729 = vpop.permute.xlu0 %728
        %730 = vrot.lane.b32.xlu0 %v715, 104
        %v731 = vpop.permute.xlu0 %730
        %732 = vrot.lane.b32.xlu0 %v710, 96
        %v733 = vpop.permute.xlu0 %732
        %vm734 = vcmask 64512
        %v735 = vsel %vm734, %v710, 0
        %v737 = vsel %vm734, %v733, 0
        %739 = vmatprep.subr.mxu0 0.0
        %740 = vmatpush1.xpose.msra.mxu0 %v737
        %741 = vmatprep.subr.mxu0 0.0
        %742 = vmatpush1.xpose.msra.mxu0 0.0
        %743 = vmatprep.subr.mxu0 0.0
        %744 = vmatpush1.xpose.msra.mxu0 0.0
        %745 = vmatprep.subr.mxu0 0.0
        %746 = vmatpush1.xpose.msra.mxu0 0.0
        %747 = vmatprep.subr.mxu0 0.0
        %748 = vmatpush1.xpose.msra.mxu0 0.0
        %749 = vmatprep.subr.mxu0 0.0
        %750 = vmatpush1.xpose.msra.mxu0 0.0
        %751 = vmatprep.subr.mxu0 0.0
        %752 = vmatpush1.xpose.msra.mxu0 0.0
        %753 = vmatprep.subr.mxu0 0.0
        %754 = vmatpush1.xpose.msra.mxu0 0.0
        %755 = vmatprep.subr.mxu0 0.0
        %756 = vmatpush1.xpose.msra.mxu0 0.0
        %757 = vmatprep.subr.mxu0 0.0
        %758 = vmatpush1.xpose.msra.mxu0 0.0
        %759 = vmatprep.subr.mxu0 0.0
        %760 = vmatpush1.xpose.msra.mxu0 0.0
        %761 = vmatprep.subr.mxu0 0.0
        %762 = vmatpush1.xpose.msra.mxu0 0.0
        %763 = vmatprep.subr.mxu0 0.0
        %764 = vmatpush1.xpose.msra.mxu0 0.0
        %765 = vmatprep.subr.mxu0 0.0
        %766 = vmatpush1.xpose.msra.mxu0 0.0
        %767 = vmatprep.subr.mxu0 0.0
        %768 = vmatpush1.xpose.msra.mxu0 0.0
        %769 = vmatprep.subr.mxu0 0.0
        %770 = vmatpush1.xpose.msra.mxu0 0.0
        %771 = vmatprep.subr.mxu0 0.0
        %772 = vmatpush1.xpose.msra.mxu0 0.0
        %773 = vmatprep.subr.mxu0 0.0
        %774 = vmatpush1.xpose.msra.mxu0 0.0
        %775 = vmatprep.subr.mxu0 0.0
        %776 = vmatpush1.xpose.msra.mxu0 0.0
        %777 = vmatprep.subr.mxu0 0.0
        %778 = vmatpush1.xpose.msra.mxu0 0.0
        %779 = vmatprep.subr.mxu0 0.0
        %780 = vmatpush1.xpose.msra.mxu0 0.0
        %781 = vmatprep.subr.mxu0 0.0
        %782 = vmatpush1.xpose.msra.mxu0 0.0
        %783 = vmatprep.subr.mxu0 0.0
        %784 = vmatpush1.xpose.msra.mxu0 0.0
        %785 = vmatprep.subr.mxu0 0.0
        %786 = vmatpush1.xpose.msra.mxu0 0.0
        %787 = vmatprep.subr.mxu0 0.0
        %788 = vmatpush1.xpose.msra.mxu0 0.0
        %789 = vmatprep.subr.mxu0 0.0
        %790 = vmatpush1.xpose.msra.mxu0 0.0
        %791 = vmatprep.subr.mxu0 0.0
        %792 = vmatpush1.xpose.msra.mxu0 0.0
        %793 = vmatprep.subr.mxu0 0.0
        %794 = vmatpush1.xpose.msra.mxu0 0.0
        %795 = vmatprep.subr.mxu0 0.0
        %796 = vmatpush1.xpose.msra.mxu0 0.0
        %797 = vmatprep.subr.mxu0 0.0
        %798 = vmatpush1.xpose.msra.mxu0 0.0
        %799 = vmatprep.subr.mxu0 0.0
        %800 = vmatpush1.xpose.msra.mxu0 0.0
        %801 = vmatprep.subr.mxu0 0.0
        %802 = vmatpush1.xpose.msra.mxu0 0.0
        %803 = vmatprep.mubr.f32.mxu0 0.0
        %804 = vmatmul.mubr.f32.gmra.mrb[0].mxu0 %v735
        %v805 = vpop.f32.mrb[0].mxu0
        %v806 = vadd.f32 0.0, %v805
        %v807 = vpop.f32.mrb[0].mxu0
        %808 = vdwg.mxu0
        %809 = vrot.lane.b32.xlu0 %v715, 96
        %v810 = vpop.permute.xlu0 %809
        %v811 = vsel %vm734, %v715, 0
        %v813 = vsel %vm734, %v810, 0
        %815 = vmatprep.subr.mxu0 0.0
        %816 = vmatpush1.xpose.msra.mxu0 %v813
        %817 = vmatprep.subr.mxu0 0.0
        %818 = vmatpush1.xpose.msra.mxu0 0.0
        %819 = vmatprep.subr.mxu0 0.0
        %820 = vmatpush1.xpose.msra.mxu0 0.0
        %821 = vmatprep.subr.mxu0 0.0
        %822 = vmatpush1.xpose.msra.mxu0 0.0
        %823 = vmatprep.subr.mxu0 0.0
        %824 = vmatpush1.xpose.msra.mxu0 0.0
        %825 = vmatprep.subr.mxu0 0.0
        %826 = vmatpush1.xpose.msra.mxu0 0.0
        %827 = vmatprep.subr.mxu0 0.0
        %828 = vmatpush1.xpose.msra.mxu0 0.0
        %829 = vmatprep.subr.mxu0 0.0
        %830 = vmatpush1.xpose.msra.mxu0 0.0
        %831 = vmatprep.subr.mxu0 0.0
        %832 = vmatpush1.xpose.msra.mxu0 0.0
        %833 = vmatprep.subr.mxu0 0.0
        %834 = vmatpush1.xpose.msra.mxu0 0.0
        %835 = vmatprep.subr.mxu0 0.0
        %836 = vmatpush1.xpose.msra.mxu0 0.0
        %837 = vmatprep.subr.mxu0 0.0
        %838 = vmatpush1.xpose.msra.mxu0 0.0
        %839 = vmatprep.subr.mxu0 0.0
        %840 = vmatpush1.xpose.msra.mxu0 0.0
        %841 = vmatprep.subr.mxu0 0.0
        %842 = vmatpush1.xpose.msra.mxu0 0.0
        %843 = vmatprep.subr.mxu0 0.0
        %844 = vmatpush1.xpose.msra.mxu0 0.0
        %845 = vmatprep.subr.mxu0 0.0
        %846 = vmatpush1.xpose.msra.mxu0 0.0
        %847 = vmatprep.subr.mxu0 0.0
        %848 = vmatpush1.xpose.msra.mxu0 0.0
        %849 = vmatprep.subr.mxu0 0.0
        %850 = vmatpush1.xpose.msra.mxu0 0.0
        %851 = vmatprep.subr.mxu0 0.0
        %852 = vmatpush1.xpose.msra.mxu0 0.0
        %853 = vmatprep.subr.mxu0 0.0
        %854 = vmatpush1.xpose.msra.mxu0 0.0
        %855 = vmatprep.subr.mxu0 0.0
        %856 = vmatpush1.xpose.msra.mxu0 0.0
        %857 = vmatprep.subr.mxu0 0.0
        %858 = vmatpush1.xpose.msra.mxu0 0.0
        %859 = vmatprep.subr.mxu0 0.0
        %860 = vmatpush1.xpose.msra.mxu0 0.0
        %861 = vmatprep.subr.mxu0 0.0
        %862 = vmatpush1.xpose.msra.mxu0 0.0
        %863 = vmatprep.subr.mxu0 0.0
        %864 = vmatpush1.xpose.msra.mxu0 0.0
        %865 = vmatprep.subr.mxu0 0.0
        %866 = vmatpush1.xpose.msra.mxu0 0.0
        %867 = vmatprep.subr.mxu0 0.0
        %868 = vmatpush1.xpose.msra.mxu0 0.0
        %869 = vmatprep.subr.mxu0 0.0
        %870 = vmatpush1.xpose.msra.mxu0 0.0
        %871 = vmatprep.subr.mxu0 0.0
        %872 = vmatpush1.xpose.msra.mxu0 0.0
        %873 = vmatprep.subr.mxu0 0.0
        %874 = vmatpush1.xpose.msra.mxu0 0.0
        %875 = vmatprep.subr.mxu0 0.0
        %876 = vmatpush1.xpose.msra.mxu0 0.0
        %877 = vmatprep.subr.mxu0 0.0
        %878 = vmatpush1.xpose.msra.mxu0 0.0
        %879 = vmatprep.mubr.f32.mxu0 0.0
        %880 = vmatmul.mubr.f32.gmra.mrb[0].mxu0 %v811
        %v881 = vpop.f32.mrb[0].mxu0
        %v882 = vadd.f32 0.0, %v881
        %v883 = vpop.f32.mrb[0].mxu0
        %884 = vdwg.mxu0
        %885 = vrot.lane.b32.xlu0 %v721, 96
        %v886 = vpop.permute.xlu0 %885
        %v887 = vsel %vm734, %v721, 0
        %v889 = vsel %vm734, %v886, 0
        %891 = vmatprep.subr.mxu0 0.0
        %892 = vmatpush1.xpose.msra.mxu0 %v889
        %893 = vmatprep.subr.mxu0 0.0
        %894 = vmatpush1.xpose.msra.mxu0 0.0
        %895 = vmatprep.subr.mxu0 0.0
        %896 = vmatpush1.xpose.msra.mxu0 0.0
        %897 = vmatprep.subr.mxu0 0.0
        %898 = vmatpush1.xpose.msra.mxu0 0.0
        %899 = vmatprep.subr.mxu0 0.0
        %900 = vmatpush1.xpose.msra.mxu0 0.0
        %901 = vmatprep.subr.mxu0 0.0
        %902 = vmatpush1.xpose.msra.mxu0 0.0
        %903 = vmatprep.subr.mxu0 0.0
        %904 = vmatpush1.xpose.msra.mxu0 0.0
        %905 = vmatprep.subr.mxu0 0.0
        %906 = vmatpush1.xpose.msra.mxu0 0.0
        %907 = vmatprep.subr.mxu0 0.0
        %908 = vmatpush1.xpose.msra.mxu0 0.0
        %909 = vmatprep.subr.mxu0 0.0
        %910 = vmatpush1.xpose.msra.mxu0 0.0
        %911 = vmatprep.subr.mxu0 0.0
        %912 = vmatpush1.xpose.msra.mxu0 0.0
        %913 = vmatprep.subr.mxu0 0.0
        %914 = vmatpush1.xpose.msra.mxu0 0.0
        %915 = vmatprep.subr.mxu0 0.0
        %916 = vmatpush1.xpose.msra.mxu0 0.0
        %917 = vmatprep.subr.mxu0 0.0
        %918 = vmatpush1.xpose.msra.mxu0 0.0
        %919 = vmatprep.subr.mxu0 0.0
        %920 = vmatpush1.xpose.msra.mxu0 0.0
        %921 = vmatprep.subr.mxu0 0.0
        %922 = vmatpush1.xpose.msra.mxu0 0.0
        %923 = vmatprep.subr.mxu0 0.0
        %924 = vmatpush1.xpose.msra.mxu0 0.0
        %925 = vmatprep.subr.mxu0 0.0
        %926 = vmatpush1.xpose.msra.mxu0 0.0
        %927 = vmatprep.subr.mxu0 0.0
        %928 = vmatpush1.xpose.msra.mxu0 0.0
        %929 = vmatprep.subr.mxu0 0.0
        %930 = vmatpush1.xpose.msra.mxu0 0.0
        %931 = vmatprep.subr.mxu0 0.0
        %932 = vmatpush1.xpose.msra.mxu0 0.0
        %933 = vmatprep.subr.mxu0 0.0
        %934 = vmatpush1.xpose.msra.mxu0 0.0
        %935 = vmatprep.subr.mxu0 0.0
        %936 = vmatpush1.xpose.msra.mxu0 0.0
        %937 = vmatprep.subr.mxu0 0.0
        %938 = vmatpush1.xpose.msra.mxu0 0.0
        %939 = vmatprep.subr.mxu0 0.0
        %940 = vmatpush1.xpose.msra.mxu0 0.0
        %941 = vmatprep.subr.mxu0 0.0
        %942 = vmatpush1.xpose.msra.mxu0 0.0
        %943 = vmatprep.subr.mxu0 0.0
        %944 = vmatpush1.xpose.msra.mxu0 0.0
        %945 = vmatprep.subr.mxu0 0.0
        %946 = vmatpush1.xpose.msra.mxu0 0.0
        %947 = vmatprep.subr.mxu0 0.0
        %948 = vmatpush1.xpose.msra.mxu0 0.0
        %949 = vmatprep.subr.mxu0 0.0
        %950 = vmatpush1.xpose.msra.mxu0 0.0
        %951 = vmatprep.subr.mxu0 0.0
        %952 = vmatpush1.xpose.msra.mxu0 0.0
        %953 = vmatprep.subr.mxu0 0.0
        %954 = vmatpush1.xpose.msra.mxu0 0.0
        %955 = vmatprep.mubr.f32.mxu0 0.0
        %956 = vmatmul.mubr.f32.gmra.mrb[0].mxu0 %v887
        %v957 = vpop.f32.mrb[0].mxu0
        %v958 = vadd.f32 0.0, %v957
        %v959 = vpop.f32.mrb[0].mxu0
        %960 = vdwg.mxu0
        %961 = vrot.lane.b32.xlu0 %v723, 96
        %v962 = vpop.permute.xlu0 %961
        %v963 = vsel %vm734, %v723, 0
        %v965 = vsel %vm734, %v962, 0
        %967 = vmatprep.subr.mxu0 0.0
        %968 = vmatpush1.xpose.msra.mxu0 %v965
        %969 = vmatprep.subr.mxu0 0.0
        %970 = vmatpush1.xpose.msra.mxu0 0.0
        %971 = vmatprep.subr.mxu0 0.0
        %972 = vmatpush1.xpose.msra.mxu0 0.0
        %973 = vmatprep.subr.mxu0 0.0
        %974 = vmatpush1.xpose.msra.mxu0 0.0
        %975 = vmatprep.subr.mxu0 0.0
        %976 = vmatpush1.xpose.msra.mxu0 0.0
        %977 = vmatprep.subr.mxu0 0.0
        %978 = vmatpush1.xpose.msra.mxu0 0.0
        %979 = vmatprep.subr.mxu0 0.0
        %980 = vmatpush1.xpose.msra.mxu0 0.0
        %981 = vmatprep.subr.mxu0 0.0
        %982 = vmatpush1.xpose.msra.mxu0 0.0
        %983 = vmatprep.subr.mxu0 0.0
        %984 = vmatpush1.xpose.msra.mxu0 0.0
        %985 = vmatprep.subr.mxu0 0.0
        %986 = vmatpush1.xpose.msra.mxu0 0.0
        %987 = vmatprep.subr.mxu0 0.0
        %988 = vmatpush1.xpose.msra.mxu0 0.0
        %989 = vmatprep.subr.mxu0 0.0
        %990 = vmatpush1.xpose.msra.mxu0 0.0
        %991 = vmatprep.subr.mxu0 0.0
        %992 = vmatpush1.xpose.msra.mxu0 0.0
        %993 = vmatprep.subr.mxu0 0.0
        %994 = vmatpush1.xpose.msra.mxu0 0.0
        %995 = vmatprep.subr.mxu0 0.0
        %996 = vmatpush1.xpose.msra.mxu0 0.0
        %997 = vmatprep.subr.mxu0 0.0
        %998 = vmatpush1.xpose.msra.mxu0 0.0
        %999 = vmatprep.subr.mxu0 0.0
        %1000 = vmatpush1.xpose.msra.mxu0 0.0
        %1001 = vmatprep.subr.mxu0 0.0
        %1002 = vmatpush1.xpose.msra.mxu0 0.0
        %1003 = vmatprep.subr.mxu0 0.0
        %1004 = vmatpush1.xpose.msra.mxu0 0.0
        %1005 = vmatprep.subr.mxu0 0.0
        %1006 = vmatpush1.xpose.msra.mxu0 0.0
        %1007 = vmatprep.subr.mxu0 0.0
        %1008 = vmatpush1.xpose.msra.mxu0 0.0
        %1009 = vmatprep.subr.mxu0 0.0
        %1010 = vmatpush1.xpose.msra.mxu0 0.0
        %1011 = vmatprep.subr.mxu0 0.0
        %1012 = vmatpush1.xpose.msra.mxu0 0.0
        %1013 = vmatprep.subr.mxu0 0.0
        %1014 = vmatpush1.xpose.msra.mxu0 0.0
        %1015 = vmatprep.subr.mxu0 0.0
        %1016 = vmatpush1.xpose.msra.mxu0 0.0
        %1017 = vmatprep.subr.mxu0 0.0
        %1018 = vmatpush1.xpose.msra.mxu0 0.0
        %1019 = vmatprep.subr.mxu0 0.0
        %1020 = vmatpush1.xpose.msra.mxu0 0.0
        %1021 = vmatprep.subr.mxu0 0.0
        %1022 = vmatpush1.xpose.msra.mxu0 0.0
        %1023 = vmatprep.subr.mxu0 0.0
        %1024 = vmatpush1.xpose.msra.mxu0 0.0
        %1025 = vmatprep.subr.mxu0 0.0
        %1026 = vmatpush1.xpose.msra.mxu0 0.0
        %1027 = vmatprep.subr.mxu0 0.0
        %1028 = vmatpush1.xpose.msra.mxu0 0.0
        %1029 = vmatprep.subr.mxu0 0.0
        %1030 = vmatpush1.xpose.msra.mxu0 0.0
        %1031 = vmatprep.mubr.f32.mxu0 0.0
        %1032 = vmatmul.mubr.f32.gmra.mrb[0].mxu0 %v963
        %v1033 = vpop.f32.mrb[0].mxu0
        %v1034 = vadd.f32 0.0, %v1033
        %v1035 = vpop.f32.mrb[0].mxu0
        %1036 = vdwg.mxu0
        %1037 = vrot.lane.b32.xlu0 %v725, 96
        %v1038 = vpop.permute.xlu0 %1037
        %v1039 = vsel %vm734, %v725, 0
        %v1041 = vsel %vm734, %v1038, 0
        %1043 = vmatprep.subr.mxu0 0.0
        %1044 = vmatpush1.xpose.msra.mxu0 %v1041
        %1045 = vmatprep.subr.mxu0 0.0
        %1046 = vmatpush1.xpose.msra.mxu0 0.0
        %1047 = vmatprep.subr.mxu0 0.0
        %1048 = vmatpush1.xpose.msra.mxu0 0.0
        %1049 = vmatprep.subr.mxu0 0.0
        %1050 = vmatpush1.xpose.msra.mxu0 0.0
        %1051 = vmatprep.subr.mxu0 0.0
        %1052 = vmatpush1.xpose.msra.mxu0 0.0
        %1053 = vmatprep.subr.mxu0 0.0
        %1054 = vmatpush1.xpose.msra.mxu0 0.0
        %1055 = vmatprep.subr.mxu0 0.0
        %1056 = vmatpush1.xpose.msra.mxu0 0.0
        %1057 = vmatprep.subr.mxu0 0.0
        %1058 = vmatpush1.xpose.msra.mxu0 0.0
        %1059 = vmatprep.subr.mxu0 0.0
        %1060 = vmatpush1.xpose.msra.mxu0 0.0
        %1061 = vmatprep.subr.mxu0 0.0
        %1062 = vmatpush1.xpose.msra.mxu0 0.0
        %1063 = vmatprep.subr.mxu0 0.0
        %1064 = vmatpush1.xpose.msra.mxu0 0.0
        %1065 = vmatprep.subr.mxu0 0.0
        %1066 = vmatpush1.xpose.msra.mxu0 0.0
        %1067 = vmatprep.subr.mxu0 0.0
        %1068 = vmatpush1.xpose.msra.mxu0 0.0
        %1069 = vmatprep.subr.mxu0 0.0
        %1070 = vmatpush1.xpose.msra.mxu0 0.0
        %1071 = vmatprep.subr.mxu0 0.0
        %1072 = vmatpush1.xpose.msra.mxu0 0.0
        %1073 = vmatprep.subr.mxu0 0.0
        %1074 = vmatpush1.xpose.msra.mxu0 0.0
        %1075 = vmatprep.subr.mxu0 0.0
        %1076 = vmatpush1.xpose.msra.mxu0 0.0
        %1077 = vmatprep.subr.mxu0 0.0
        %1078 = vmatpush1.xpose.msra.mxu0 0.0
        %1079 = vmatprep.subr.mxu0 0.0
        %1080 = vmatpush1.xpose.msra.mxu0 0.0
        %1081 = vmatprep.subr.mxu0 0.0
        %1082 = vmatpush1.xpose.msra.mxu0 0.0
        %1083 = vmatprep.subr.mxu0 0.0
        %1084 = vmatpush1.xpose.msra.mxu0 0.0
        %1085 = vmatprep.subr.mxu0 0.0
        %1086 = vmatpush1.xpose.msra.mxu0 0.0
        %1087 = vmatprep.subr.mxu0 0.0
        %1088 = vmatpush1.xpose.msra.mxu0 0.0
        %1089 = vmatprep.subr.mxu0 0.0
        %1090 = vmatpush1.xpose.msra.mxu0 0.0
        %1091 = vmatprep.subr.mxu0 0.0
        %1092 = vmatpush1.xpose.msra.mxu0 0.0
        %1093 = vmatprep.subr.mxu0 0.0
        %1094 = vmatpush1.xpose.msra.mxu0 0.0
        %1095 = vmatprep.subr.mxu0 0.0
        %1096 = vmatpush1.xpose.msra.mxu0 0.0
        %1097 = vmatprep.subr.mxu0 0.0
        %1098 = vmatpush1.xpose.msra.mxu0 0.0
        %1099 = vmatprep.subr.mxu0 0.0
        %1100 = vmatpush1.xpose.msra.mxu0 0.0
        %1101 = vmatprep.subr.mxu0 0.0
        %1102 = vmatpush1.xpose.msra.mxu0 0.0
        %1103 = vmatprep.subr.mxu0 0.0
        %1104 = vmatpush1.xpose.msra.mxu0 0.0
        %1105 = vmatprep.subr.mxu0 0.0
        %1106 = vmatpush1.xpose.msra.mxu0 0.0
        %1107 = vmatprep.mubr.f32.mxu0 0.0
        %1108 = vmatmul.mubr.f32.gmra.mrb[0].mxu0 %v1039
        %v1109 = vpop.f32.mrb[0].mxu0
        %v1110 = vadd.f32 0.0, %v1109
        %v1111 = vpop.f32.mrb[0].mxu0
        %1112 = vdwg.mxu0
        %1113 = vrot.lane.b32.xlu0 %v727, 96
        %v1114 = vpop.permute.xlu0 %1113
        %v1115 = vsel %vm734, %v727, 0
        %v1117 = vsel %vm734, %v1114, 0
        %1119 = vmatprep.subr.mxu0 0.0
        %1120 = vmatpush1.xpose.msra.mxu0 %v1117
        %1121 = vmatprep.subr.mxu0 0.0
        %1122 = vmatpush1.xpose.msra.mxu0 0.0
        %1123 = vmatprep.subr.mxu0 0.0
        %1124 = vmatpush1.xpose.msra.mxu0 0.0
        %1125 = vmatprep.subr.mxu0 0.0
        %1126 = vmatpush1.xpose.msra.mxu0 0.0
        %1127 = vmatprep.subr.mxu0 0.0
        %1128 = vmatpush1.xpose.msra.mxu0 0.0
        %1129 = vmatprep.subr.mxu0 0.0
        %1130 = vmatpush1.xpose.msra.mxu0 0.0
        %1131 = vmatprep.subr.mxu0 0.0
        %1132 = vmatpush1.xpose.msra.mxu0 0.0
        %1133 = vmatprep.subr.mxu0 0.0
        %1134 = vmatpush1.xpose.msra.mxu0 0.0
        %1135 = vmatprep.subr.mxu0 0.0
        %1136 = vmatpush1.xpose.msra.mxu0 0.0
        %1137 = vmatprep.subr.mxu0 0.0
        %1138 = vmatpush1.xpose.msra.mxu0 0.0
        %1139 = vmatprep.subr.mxu0 0.0
        %1140 = vmatpush1.xpose.msra.mxu0 0.0
        %1141 = vmatprep.subr.mxu0 0.0
        %1142 = vmatpush1.xpose.msra.mxu0 0.0
        %1143 = vmatprep.subr.mxu0 0.0
        %1144 = vmatpush1.xpose.msra.mxu0 0.0
        %1145 = vmatprep.subr.mxu0 0.0
        %1146 = vmatpush1.xpose.msra.mxu0 0.0
        %1147 = vmatprep.subr.mxu0 0.0
        %1148 = vmatpush1.xpose.msra.mxu0 0.0
        %1149 = vmatprep.subr.mxu0 0.0
        %1150 = vmatpush1.xpose.msra.mxu0 0.0
        %1151 = vmatprep.subr.mxu0 0.0
        %1152 = vmatpush1.xpose.msra.mxu0 0.0
        %1153 = vmatprep.subr.mxu0 0.0
        %1154 = vmatpush1.xpose.msra.mxu0 0.0
        %1155 = vmatprep.subr.mxu0 0.0
        %1156 = vmatpush1.xpose.msra.mxu0 0.0
        %1157 = vmatprep.subr.mxu0 0.0
        %1158 = vmatpush1.xpose.msra.mxu0 0.0
        %1159 = vmatprep.subr.mxu0 0.0
        %1160 = vmatpush1.xpose.msra.mxu0 0.0
        %1161 = vmatprep.subr.mxu0 0.0
        %1162 = vmatpush1.xpose.msra.mxu0 0.0
        %1163 = vmatprep.subr.mxu0 0.0
        %1164 = vmatpush1.xpose.msra.mxu0 0.0
        %1165 = vmatprep.subr.mxu0 0.0
        %1166 = vmatpush1.xpose.msra.mxu0 0.0
        %1167 = vmatprep.subr.mxu0 0.0
        %1168 = vmatpush1.xpose.msra.mxu0 0.0
        %1169 = vmatprep.subr.mxu0 0.0
        %1170 = vmatpush1.xpose.msra.mxu0 0.0
        %1171 = vmatprep.subr.mxu0 0.0
        %1172 = vmatpush1.xpose.msra.mxu0 0.0
        %1173 = vmatprep.subr.mxu0 0.0
        %1174 = vmatpush1.xpose.msra.mxu0 0.0
        %1175 = vmatprep.subr.mxu0 0.0
        %1176 = vmatpush1.xpose.msra.mxu0 0.0
        %1177 = vmatprep.subr.mxu0 0.0
        %1178 = vmatpush1.xpose.msra.mxu0 0.0
        %1179 = vmatprep.subr.mxu0 0.0
        %1180 = vmatpush1.xpose.msra.mxu0 0.0
        %1181 = vmatprep.subr.mxu0 0.0
        %1182 = vmatpush1.xpose.msra.mxu0 0.0
        %1183 = vmatprep.mubr.f32.mxu0 0.0
        %1184 = vmatmul.mubr.f32.gmra.mrb[0].mxu0 %v1115
        %v1185 = vpop.f32.mrb[0].mxu0
        %v1186 = vadd.f32 0.0, %v1185
        %v1187 = vpop.f32.mrb[0].mxu0
        %1188 = vdwg.mxu0
        %1189 = vrot.lane.b32.xlu0 %v729, 96
        %v1190 = vpop.permute.xlu0 %1189
        %v1191 = vsel %vm734, %v729, 0
        %v1193 = vsel %vm734, %v1190, 0
        %1195 = vmatprep.subr.mxu0 0.0
        %1196 = vmatpush1.xpose.msra.mxu0 %v1193
        %1197 = vmatprep.subr.mxu0 0.0
        %1198 = vmatpush1.xpose.msra.mxu0 0.0
        %1199 = vmatprep.subr.mxu0 0.0
        %1200 = vmatpush1.xpose.msra.mxu0 0.0
        %1201 = vmatprep.subr.mxu0 0.0
        %1202 = vmatpush1.xpose.msra.mxu0 0.0
        %1203 = vmatprep.subr.mxu0 0.0
        %1204 = vmatpush1.xpose.msra.mxu0 0.0
        %1205 = vmatprep.subr.mxu0 0.0
        %1206 = vmatpush1.xpose.msra.mxu0 0.0
        %1207 = vmatprep.subr.mxu0 0.0
        %1208 = vmatpush1.xpose.msra.mxu0 0.0
        %1209 = vmatprep.subr.mxu0 0.0
        %1210 = vmatpush1.xpose.msra.mxu0 0.0
        %1211 = vmatprep.subr.mxu0 0.0
        %1212 = vmatpush1.xpose.msra.mxu0 0.0
        %1213 = vmatprep.subr.mxu0 0.0
        %1214 = vmatpush1.xpose.msra.mxu0 0.0
        %1215 = vmatprep.subr.mxu0 0.0
        %1216 = vmatpush1.xpose.msra.mxu0 0.0
        %1217 = vmatprep.subr.mxu0 0.0
        %1218 = vmatpush1.xpose.msra.mxu0 0.0
        %1219 = vmatprep.subr.mxu0 0.0
        %1220 = vmatpush1.xpose.msra.mxu0 0.0
        %1221 = vmatprep.subr.mxu0 0.0
        %1222 = vmatpush1.xpose.msra.mxu0 0.0
        %1223 = vmatprep.subr.mxu0 0.0
        %1224 = vmatpush1.xpose.msra.mxu0 0.0
        %1225 = vmatprep.subr.mxu0 0.0
        %1226 = vmatpush1.xpose.msra.mxu0 0.0
        %1227 = vmatprep.subr.mxu0 0.0
        %1228 = vmatpush1.xpose.msra.mxu0 0.0
        %1229 = vmatprep.subr.mxu0 0.0
        %1230 = vmatpush1.xpose.msra.mxu0 0.0
        %1231 = vmatprep.subr.mxu0 0.0
        %1232 = vmatpush1.xpose.msra.mxu0 0.0
        %1233 = vmatprep.subr.mxu0 0.0
        %1234 = vmatpush1.xpose.msra.mxu0 0.0
        %1235 = vmatprep.subr.mxu0 0.0
        %1236 = vmatpush1.xpose.msra.mxu0 0.0
        %1237 = vmatprep.subr.mxu0 0.0
        %1238 = vmatpush1.xpose.msra.mxu0 0.0
        %1239 = vmatprep.subr.mxu0 0.0
        %1240 = vmatpush1.xpose.msra.mxu0 0.0
        %1241 = vmatprep.subr.mxu0 0.0
        %1242 = vmatpush1.xpose.msra.mxu0 0.0
        %1243 = vmatprep.subr.mxu0 0.0
        %1244 = vmatpush1.xpose.msra.mxu0 0.0
        %1245 = vmatprep.subr.mxu0 0.0
        %1246 = vmatpush1.xpose.msra.mxu0 0.0
        %1247 = vmatprep.subr.mxu0 0.0
        %1248 = vmatpush1.xpose.msra.mxu0 0.0
        %1249 = vmatprep.subr.mxu0 0.0
        %1250 = vmatpush1.xpose.msra.mxu0 0.0
        %1251 = vmatprep.subr.mxu0 0.0
        %1252 = vmatpush1.xpose.msra.mxu0 0.0
        %1253 = vmatprep.subr.mxu0 0.0
        %1254 = vmatpush1.xpose.msra.mxu0 0.0
        %1255 = vmatprep.subr.mxu0 0.0
        %1256 = vmatpush1.xpose.msra.mxu0 0.0
        %1257 = vmatprep.subr.mxu0 0.0
        %1258 = vmatpush1.xpose.msra.mxu0 0.0
        %1259 = vmatprep.mubr.f32.mxu0 0.0
        %1260 = vmatmul.mubr.f32.gmra.mrb[0].mxu0 %v1191
        %v1261 = vpop.f32.mrb[0].mxu0
        %v1262 = vadd.f32 0.0, %v1261
        %v1263 = vpop.f32.mrb[0].mxu0
        %1264 = vdwg.mxu0
        %1265 = vrot.lane.b32.xlu0 %v731, 96
        %v1266 = vpop.permute.xlu0 %1265
        %v1267 = vsel %vm734, %v731, 0
        %v1269 = vsel %vm734, %v1266, 0
        %1271 = vmatprep.subr.mxu0 0.0
        %1272 = vmatpush1.xpose.msra.mxu0 %v1269
        %1273 = vmatprep.subr.mxu0 0.0
        %1274 = vmatpush1.xpose.msra.mxu0 0.0
        %1275 = vmatprep.subr.mxu0 0.0
        %1276 = vmatpush1.xpose.msra.mxu0 0.0
        %1277 = vmatprep.subr.mxu0 0.0
        %1278 = vmatpush1.xpose.msra.mxu0 0.0
        %1279 = vmatprep.subr.mxu0 0.0
        %1280 = vmatpush1.xpose.msra.mxu0 0.0
        %1281 = vmatprep.subr.mxu0 0.0
        %1282 = vmatpush1.xpose.msra.mxu0 0.0
        %1283 = vmatprep.subr.mxu0 0.0
        %1284 = vmatpush1.xpose.msra.mxu0 0.0
        %1285 = vmatprep.subr.mxu0 0.0
        %1286 = vmatpush1.xpose.msra.mxu0 0.0
        %1287 = vmatprep.subr.mxu0 0.0
        %1288 = vmatpush1.xpose.msra.mxu0 0.0
        %1289 = vmatprep.subr.mxu0 0.0
        %1290 = vmatpush1.xpose.msra.mxu0 0.0
        %1291 = vmatprep.subr.mxu0 0.0
        %1292 = vmatpush1.xpose.msra.mxu0 0.0
        %1293 = vmatprep.subr.mxu0 0.0
        %1294 = vmatpush1.xpose.msra.mxu0 0.0
        %1295 = vmatprep.subr.mxu0 0.0
        %1296 = vmatpush1.xpose.msra.mxu0 0.0
        %1297 = vmatprep.subr.mxu0 0.0
        %1298 = vmatpush1.xpose.msra.mxu0 0.0
        %1299 = vmatprep.subr.mxu0 0.0
        %1300 = vmatpush1.xpose.msra.mxu0 0.0
        %1301 = vmatprep.subr.mxu0 0.0
        %1302 = vmatpush1.xpose.msra.mxu0 0.0
        %1303 = vmatprep.subr.mxu0 0.0
        %1304 = vmatpush1.xpose.msra.mxu0 0.0
        %1305 = vmatprep.subr.mxu0 0.0
        %1306 = vmatpush1.xpose.msra.mxu0 0.0
        %1307 = vmatprep.subr.mxu0 0.0
        %1308 = vmatpush1.xpose.msra.mxu0 0.0
        %1309 = vmatprep.subr.mxu0 0.0
        %1310 = vmatpush1.xpose.msra.mxu0 0.0
        %1311 = vmatprep.subr.mxu0 0.0
        %1312 = vmatpush1.xpose.msra.mxu0 0.0
        %1313 = vmatprep.subr.mxu0 0.0
        %1314 = vmatpush1.xpose.msra.mxu0 0.0
        %1315 = vmatprep.subr.mxu0 0.0
        %1316 = vmatpush1.xpose.msra.mxu0 0.0
        %1317 = vmatprep.subr.mxu0 0.0
        %1318 = vmatpush1.xpose.msra.mxu0 0.0
        %1319 = vmatprep.subr.mxu0 0.0
        %1320 = vmatpush1.xpose.msra.mxu0 0.0
        %1321 = vmatprep.subr.mxu0 0.0
        %1322 = vmatpush1.xpose.msra.mxu0 0.0
        %1323 = vmatprep.subr.mxu0 0.0
        %1324 = vmatpush1.xpose.msra.mxu0 0.0
        %1325 = vmatprep.subr.mxu0 0.0
        %1326 = vmatpush1.xpose.msra.mxu0 0.0
        %1327 = vmatprep.subr.mxu0 0.0
        %1328 = vmatpush1.xpose.msra.mxu0 0.0
        %1329 = vmatprep.subr.mxu0 0.0
        %1330 = vmatpush1.xpose.msra.mxu0 0.0
        %1331 = vmatprep.subr.mxu0 0.0
        %1332 = vmatpush1.xpose.msra.mxu0 0.0
        %1333 = vmatprep.subr.mxu0 0.0
        %1334 = vmatpush1.xpose.msra.mxu0 0.0
        %1335 = vmatprep.mubr.f32.mxu0 0.0
        %1336 = vmatmul.mubr.f32.gmra.mrb[0].mxu0 %v1267
        %v1337 = vpop.f32.mrb[0].mxu0
        %v1338 = vadd.f32 0.0, %v1337
        %v1339 = vpop.f32.mrb[0].mxu0
        %1340 = vdwg.mxu0
        %v1341 = vsel %vm734, %v806, -inf
        %1342 = vmax.xlane.f32.xlu0 %v1341
        %v1343 = vpop.xlane.xlu0 %1342
        %v1344 = vsel %vm734, %v882, -inf
        %1345 = vmax.xlane.f32.xlu0 %v1344
        %v1346 = vpop.xlane.xlu0 %1345
        %v1347 = vsel %vm734, %v958, -inf
        %1348 = vmax.xlane.f32.xlu0 %v1347
        %v1349 = vpop.xlane.xlu0 %1348
        %v1350 = vsel %vm734, %v1034, -inf
        %1351 = vmax.xlane.f32.xlu0 %v1350
        %v1352 = vpop.xlane.xlu0 %1351
        %v1353 = vsel %vm734, %v1110, -inf
        %1354 = vmax.xlane.f32.xlu0 %v1353
        %v1355 = vpop.xlane.xlu0 %1354
        %v1356 = vsel %vm734, %v1186, -inf
        %1357 = vmax.xlane.f32.xlu0 %v1356
        %v1358 = vpop.xlane.xlu0 %1357
        %v1359 = vsel %vm734, %v1262, -inf
        %1360 = vmax.xlane.f32.xlu0 %v1359
        %v1361 = vpop.xlane.xlu0 %1360
        %v1362 = vsel %vm734, %v1338, -inf
        %1363 = vmax.xlane.f32.xlu0 %v1362
        %v1364 = vpop.xlane.xlu0 %1363
        %v1365 = vsub.f32 %v806, %v1343
        %v1366 = vsub.f32 %v882, %v1346
        %v1367 = vsub.f32 %v958, %v1349
        %v1368 = vsub.f32 %v1034, %v1352
        %v1369 = vsub.f32 %v1110, %v1355
        %v1370 = vsub.f32 %v1186, %v1358
        %v1371 = vsub.f32 %v1262, %v1361
        %v1372 = vsub.f32 %v1338, %v1364
        %v1373 = vmul.f32 %v1365, 1.442695
        %v1374 = vpow.pop %v1373
        %v1375 = vmul.f32 %v1366, 1.442695
        %v1376 = vpow.pop %v1375
        %v1377 = vmul.f32 %v1367, 1.442695
        %v1378 = vpow.pop %v1377
        %v1379 = vmul.f32 %v1368, 1.442695
        %v1380 = vpow.pop %v1379
        %v1381 = vmul.f32 %v1369, 1.442695
        %v1382 = vpow.pop %v1381
        %v1383 = vmul.f32 %v1370, 1.442695
        %v1384 = vpow.pop %v1383
        %v1385 = vmul.f32 %v1371, 1.442695
        %v1386 = vpow.pop %v1385
        %v1387 = vmul.f32 %v1372, 1.442695
        %v1388 = vpow.pop %v1387
        %v1389 = vsel %vm734, %v1374, 0.0
        %1390 = vadd.xlane.f32.xlu0 %v1389
        %v1391 = vpop.xlane.xlu0 %1390
        %v1392 = vsel %vm734, %v1376, 0.0
        %1393 = vadd.xlane.f32.xlu0 %v1392
        %v1394 = vpop.xlane.xlu0 %1393
        %v1395 = vsel %vm734, %v1378, 0.0
        %1396 = vadd.xlane.f32.xlu0 %v1395
        %v1397 = vpop.xlane.xlu0 %1396
        %v1398 = vsel %vm734, %v1380, 0.0
        %1399 = vadd.xlane.f32.xlu0 %v1398
        %v1400 = vpop.xlane.xlu0 %1399
        %v1401 = vsel %vm734, %v1382, 0.0
        %1402 = vadd.xlane.f32.xlu0 %v1401
        %v1403 = vpop.xlane.xlu0 %1402
        %v1404 = vsel %vm734, %v1384, 0.0
        %1405 = vadd.xlane.f32.xlu0 %v1404
        %v1406 = vpop.xlane.xlu0 %1405
        %v1407 = vsel %vm734, %v1386, 0.0
        %1408 = vadd.xlane.f32.xlu0 %v1407
        %v1409 = vpop.xlane.xlu0 %1408
        %v1410 = vsel %vm734, %v1388, 0.0
        %1411 = vadd.xlane.f32.xlu0 %v1410
        %v1412 = vpop.xlane.xlu0 %1411
        %v1413 = vrcp.pop %v1391
        %v1414 = vrcp.pop %v1394
        %v1415 = vrcp.pop %v1397
        %v1416 = vrcp.pop %v1400
        %v1417 = vrcp.pop %v1403
        %v1418 = vrcp.pop %v1406
        %v1419 = vrcp.pop %v1409
        %v1420 = vrcp.pop %v1412
        %v1421 = vmul.f32 %v1374, %v1413
        %v1422 = vmul.f32 %v1376, %v1414
        %v1423 = vmul.f32 %v1378, %v1415
        %v1424 = vmul.f32 %v1380, %v1416
        %v1425 = vmul.f32 %v1382, %v1417
        %v1426 = vmul.f32 %v1384, %v1418
        %v1427 = vmul.f32 %v1386, %v1419
        %v1428 = vmul.f32 %v1388, %v1420
        %1429 = vrot.lane.b32.xlu0 %v710, 64
        %v1430 = vpop.permute.xlu0 %1429
        %v1433 = vsel %vm734, %v1421, 0
        %1435 = vmatprep.subr.mxu0 0.0
        %1436 = vmatpush1.msra.mxu0 %v1430
        %1437 = vmatprep.subr.mxu0 0.0
        %1438 = vmatpush1.msra.mxu0 0.0
        %1439 = vmatprep.subr.mxu0 0.0
        %1440 = vmatpush1.msra.mxu0 0.0
        %1441 = vmatprep.subr.mxu0 0.0
        %1442 = vmatpush1.msra.mxu0 0.0
        %1443 = vmatprep.subr.mxu0 0.0
        %1444 = vmatpush1.msra.mxu0 0.0
        %1445 = vmatprep.subr.mxu0 0.0
        %1446 = vmatpush1.msra.mxu0 0.0
        %1447 = vmatprep.subr.mxu0 0.0
        %1448 = vmatpush1.msra.mxu0 0.0
        %1449 = vmatprep.subr.mxu0 0.0
        %1450 = vmatpush1.msra.mxu0 0.0
        %1451 = vmatprep.subr.mxu0 0.0
        %1452 = vmatpush1.msra.mxu0 0.0
        %1453 = vmatprep.subr.mxu0 0.0
        %1454 = vmatpush1.msra.mxu0 0.0
        %1455 = vmatprep.subr.mxu0 0.0
        %1456 = vmatpush1.msra.mxu0 0.0
        %1457 = vmatprep.subr.mxu0 0.0
        %1458 = vmatpush1.msra.mxu0 0.0
        %1459 = vmatprep.subr.mxu0 0.0
        %1460 = vmatpush1.msra.mxu0 0.0
        %1461 = vmatprep.subr.mxu0 0.0
        %1462 = vmatpush1.msra.mxu0 0.0
        %1463 = vmatprep.subr.mxu0 0.0
        %1464 = vmatpush1.msra.mxu0 0.0
        %1465 = vmatprep.subr.mxu0 0.0
        %1466 = vmatpush1.msra.mxu0 0.0
        %1467 = vmatprep.subr.mxu0 0.0
        %1468 = vmatpush1.msra.mxu0 0.0
        %1469 = vmatprep.subr.mxu0 0.0
        %1470 = vmatpush1.msra.mxu0 0.0
        %1471 = vmatprep.subr.mxu0 0.0
        %1472 = vmatpush1.msra.mxu0 0.0
        %1473 = vmatprep.subr.mxu0 0.0
        %1474 = vmatpush1.msra.mxu0 0.0
        %1475 = vmatprep.subr.mxu0 0.0
        %1476 = vmatpush1.msra.mxu0 0.0
        %1477 = vmatprep.subr.mxu0 0.0
        %1478 = vmatpush1.msra.mxu0 0.0
        %1479 = vmatprep.subr.mxu0 0.0
        %1480 = vmatpush1.msra.mxu0 0.0
        %1481 = vmatprep.subr.mxu0 0.0
        %1482 = vmatpush1.msra.mxu0 0.0
        %1483 = vmatprep.subr.mxu0 0.0
        %1484 = vmatpush1.msra.mxu0 0.0
        %1485 = vmatprep.subr.mxu0 0.0
        %1486 = vmatpush1.msra.mxu0 0.0
        %1487 = vmatprep.subr.mxu0 0.0
        %1488 = vmatpush1.msra.mxu0 0.0
        %1489 = vmatprep.subr.mxu0 0.0
        %1490 = vmatpush1.msra.mxu0 0.0
        %1491 = vmatprep.subr.mxu0 0.0
        %1492 = vmatpush1.msra.mxu0 0.0
        %1493 = vmatprep.subr.mxu0 0.0
        %1494 = vmatpush1.msra.mxu0 0.0
        %1495 = vmatprep.subr.mxu0 0.0
        %1496 = vmatpush1.msra.mxu0 0.0
        %1497 = vmatprep.subr.mxu0 0.0
        %1498 = vmatpush1.msra.mxu0 0.0
        %1499 = vmatprep.mubr.f32.mxu0 0.0
        %1500 = vmatmul.mubr.f32.gmra.mrb[0].mxu0 %v1433
        %v1501 = vpop.f32.mrb[0].mxu0
        %v1502 = vadd.f32 0.0, %v1501
        %v1503 = vpop.f32.mrb[0].mxu0
        %1504 = vdwg.mxu0
        %1505 = vrot.lane.b32.xlu0 %v715, 64
        %v1506 = vpop.permute.xlu0 %1505
        %v1509 = vsel %vm734, %v1422, 0
        %1511 = vmatprep.subr.mxu0 0.0
        %1512 = vmatpush1.msra.mxu0 %v1506
        %1513 = vmatprep.subr.mxu0 0.0
        %1514 = vmatpush1.msra.mxu0 0.0
        %1515 = vmatprep.subr.mxu0 0.0
        %1516 = vmatpush1.msra.mxu0 0.0
        %1517 = vmatprep.subr.mxu0 0.0
        %1518 = vmatpush1.msra.mxu0 0.0
        %1519 = vmatprep.subr.mxu0 0.0
        %1520 = vmatpush1.msra.mxu0 0.0
        %1521 = vmatprep.subr.mxu0 0.0
        %1522 = vmatpush1.msra.mxu0 0.0
        %1523 = vmatprep.subr.mxu0 0.0
        %1524 = vmatpush1.msra.mxu0 0.0
        %1525 = vmatprep.subr.mxu0 0.0
        %1526 = vmatpush1.msra.mxu0 0.0
        %1527 = vmatprep.subr.mxu0 0.0
        %1528 = vmatpush1.msra.mxu0 0.0
        %1529 = vmatprep.subr.mxu0 0.0
        %1530 = vmatpush1.msra.mxu0 0.0
        %1531 = vmatprep.subr.mxu0 0.0
        %1532 = vmatpush1.msra.mxu0 0.0
        %1533 = vmatprep.subr.mxu0 0.0
        %1534 = vmatpush1.msra.mxu0 0.0
        %1535 = vmatprep.subr.mxu0 0.0
        %1536 = vmatpush1.msra.mxu0 0.0
        %1537 = vmatprep.subr.mxu0 0.0
        %1538 = vmatpush1.msra.mxu0 0.0
        %1539 = vmatprep.subr.mxu0 0.0
        %1540 = vmatpush1.msra.mxu0 0.0
        %1541 = vmatprep.subr.mxu0 0.0
        %1542 = vmatpush1.msra.mxu0 0.0
        %1543 = vmatprep.subr.mxu0 0.0
        %1544 = vmatpush1.msra.mxu0 0.0
        %1545 = vmatprep.subr.mxu0 0.0
        %1546 = vmatpush1.msra.mxu0 0.0
        %1547 = vmatprep.subr.mxu0 0.0
        %1548 = vmatpush1.msra.mxu0 0.0
        %1549 = vmatprep.subr.mxu0 0.0
        %1550 = vmatpush1.msra.mxu0 0.0
        %1551 = vmatprep.subr.mxu0 0.0
        %1552 = vmatpush1.msra.mxu0 0.0
        %1553 = vmatprep.subr.mxu0 0.0
        %1554 = vmatpush1.msra.mxu0 0.0
        %1555 = vmatprep.subr.mxu0 0.0
        %1556 = vmatpush1.msra.mxu0 0.0
        %1557 = vmatprep.subr.mxu0 0.0
        %1558 = vmatpush1.msra.mxu0 0.0
        %1559 = vmatprep.subr.mxu0 0.0
        %1560 = vmatpush1.msra.mxu0 0.0
        %1561 = vmatprep.subr.mxu0 0.0
        %1562 = vmatpush1.msra.mxu0 0.0
        %1563 = vmatprep.subr.mxu0 0.0
        %1564 = vmatpush1.msra.mxu0 0.0
        %1565 = vmatprep.subr.mxu0 0.0
        %1566 = vmatpush1.msra.mxu0 0.0
        %1567 = vmatprep.subr.mxu0 0.0
        %1568 = vmatpush1.msra.mxu0 0.0
        %1569 = vmatprep.subr.mxu0 0.0
        %1570 = vmatpush1.msra.mxu0 0.0
        %1571 = vmatprep.subr.mxu0 0.0
        %1572 = vmatpush1.msra.mxu0 0.0
        %1573 = vmatprep.subr.mxu0 0.0
        %1574 = vmatpush1.msra.mxu0 0.0
        %1575 = vmatprep.mubr.f32.mxu0 0.0
        %1576 = vmatmul.mubr.f32.gmra.mrb[0].mxu0 %v1509
        %v1577 = vpop.f32.mrb[0].mxu0
        %v1578 = vadd.f32 0.0, %v1577
        %v1579 = vpop.f32.mrb[0].mxu0
        %1580 = vdwg.mxu0
        %1581 = vrot.lane.b32.xlu0 %v721, 64
        %v1582 = vpop.permute.xlu0 %1581
        %v1585 = vsel %vm734, %v1423, 0
        %1587 = vmatprep.subr.mxu0 0.0
        %1588 = vmatpush1.msra.mxu0 %v1582
        %1589 = vmatprep.subr.mxu0 0.0
        %1590 = vmatpush1.msra.mxu0 0.0
        %1591 = vmatprep.subr.mxu0 0.0
        %1592 = vmatpush1.msra.mxu0 0.0
        %1593 = vmatprep.subr.mxu0 0.0
        %1594 = vmatpush1.msra.mxu0 0.0
        %1595 = vmatprep.subr.mxu0 0.0
        %1596 = vmatpush1.msra.mxu0 0.0
        %1597 = vmatprep.subr.mxu0 0.0
        %1598 = vmatpush1.msra.mxu0 0.0
        %1599 = vmatprep.subr.mxu0 0.0
        %1600 = vmatpush1.msra.mxu0 0.0
        %1601 = vmatprep.subr.mxu0 0.0
        %1602 = vmatpush1.msra.mxu0 0.0
        %1603 = vmatprep.subr.mxu0 0.0
        %1604 = vmatpush1.msra.mxu0 0.0
        %1605 = vmatprep.subr.mxu0 0.0
        %1606 = vmatpush1.msra.mxu0 0.0
        %1607 = vmatprep.subr.mxu0 0.0
        %1608 = vmatpush1.msra.mxu0 0.0
        %1609 = vmatprep.subr.mxu0 0.0
        %1610 = vmatpush1.msra.mxu0 0.0
        %1611 = vmatprep.subr.mxu0 0.0
        %1612 = vmatpush1.msra.mxu0 0.0
        %1613 = vmatprep.subr.mxu0 0.0
        %1614 = vmatpush1.msra.mxu0 0.0
        %1615 = vmatprep.subr.mxu0 0.0
        %1616 = vmatpush1.msra.mxu0 0.0
        %1617 = vmatprep.subr.mxu0 0.0
        %1618 = vmatpush1.msra.mxu0 0.0
        %1619 = vmatprep.subr.mxu0 0.0
        %1620 = vmatpush1.msra.mxu0 0.0
        %1621 = vmatprep.subr.mxu0 0.0
        %1622 = vmatpush1.msra.mxu0 0.0
        %1623 = vmatprep.subr.mxu0 0.0
        %1624 = vmatpush1.msra.mxu0 0.0
        %1625 = vmatprep.subr.mxu0 0.0
        %1626 = vmatpush1.msra.mxu0 0.0
        %1627 = vmatprep.subr.mxu0 0.0
        %1628 = vmatpush1.msra.mxu0 0.0
        %1629 = vmatprep.subr.mxu0 0.0
        %1630 = vmatpush1.msra.mxu0 0.0
        %1631 = vmatprep.subr.mxu0 0.0
        %1632 = vmatpush1.msra.mxu0 0.0
        %1633 = vmatprep.subr.mxu0 0.0
        %1634 = vmatpush1.msra.mxu0 0.0
        %1635 = vmatprep.subr.mxu0 0.0
        %1636 = vmatpush1.msra.mxu0 0.0
        %1637 = vmatprep.subr.mxu0 0.0
        %1638 = vmatpush1.msra.mxu0 0.0
        %1639 = vmatprep.subr.mxu0 0.0
        %1640 = vmatpush1.msra.mxu0 0.0
        %1641 = vmatprep.subr.mxu0 0.0
        %1642 = vmatpush1.msra.mxu0 0.0
        %1643 = vmatprep.subr.mxu0 0.0
        %1644 = vmatpush1.msra.mxu0 0.0
        %1645 = vmatprep.subr.mxu0 0.0
        %1646 = vmatpush1.msra.mxu0 0.0
        %1647 = vmatprep.subr.mxu0 0.0
        %1648 = vmatpush1.msra.mxu0 0.0
        %1649 = vmatprep.subr.mxu0 0.0
        %1650 = vmatpush1.msra.mxu0 0.0
        %1651 = vmatprep.mubr.f32.mxu0 0.0
        %1652 = vmatmul.mubr.f32.gmra.mrb[0].mxu0 %v1585
        %v1653 = vpop.f32.mrb[0].mxu0
        %v1654 = vadd.f32 0.0, %v1653
        %v1655 = vpop.f32.mrb[0].mxu0
        %1656 = vdwg.mxu0
        %1657 = vrot.lane.b32.xlu0 %v723, 64
        %v1658 = vpop.permute.xlu0 %1657
        %v1661 = vsel %vm734, %v1424, 0
        %1663 = vmatprep.subr.mxu0 0.0
        %1664 = vmatpush1.msra.mxu0 %v1658
        %1665 = vmatprep.subr.mxu0 0.0
        %1666 = vmatpush1.msra.mxu0 0.0
        %1667 = vmatprep.subr.mxu0 0.0
        %1668 = vmatpush1.msra.mxu0 0.0
        %1669 = vmatprep.subr.mxu0 0.0
        %1670 = vmatpush1.msra.mxu0 0.0
        %1671 = vmatprep.subr.mxu0 0.0
        %1672 = vmatpush1.msra.mxu0 0.0
        %1673 = vmatprep.subr.mxu0 0.0
        %1674 = vmatpush1.msra.mxu0 0.0
        %1675 = vmatprep.subr.mxu0 0.0
        %1676 = vmatpush1.msra.mxu0 0.0
        %1677 = vmatprep.subr.mxu0 0.0
        %1678 = vmatpush1.msra.mxu0 0.0
        %1679 = vmatprep.subr.mxu0 0.0
        %1680 = vmatpush1.msra.mxu0 0.0
        %1681 = vmatprep.subr.mxu0 0.0
        %1682 = vmatpush1.msra.mxu0 0.0
        %1683 = vmatprep.subr.mxu0 0.0
        %1684 = vmatpush1.msra.mxu0 0.0
        %1685 = vmatprep.subr.mxu0 0.0
        %1686 = vmatpush1.msra.mxu0 0.0
        %1687 = vmatprep.subr.mxu0 0.0
        %1688 = vmatpush1.msra.mxu0 0.0
        %1689 = vmatprep.subr.mxu0 0.0
        %1690 = vmatpush1.msra.mxu0 0.0
        %1691 = vmatprep.subr.mxu0 0.0
        %1692 = vmatpush1.msra.mxu0 0.0
        %1693 = vmatprep.subr.mxu0 0.0
        %1694 = vmatpush1.msra.mxu0 0.0
        %1695 = vmatprep.subr.mxu0 0.0
        %1696 = vmatpush1.msra.mxu0 0.0
        %1697 = vmatprep.subr.mxu0 0.0
        %1698 = vmatpush1.msra.mxu0 0.0
        %1699 = vmatprep.subr.mxu0 0.0
        %1700 = vmatpush1.msra.mxu0 0.0
        %1701 = vmatprep.subr.mxu0 0.0
        %1702 = vmatpush1.msra.mxu0 0.0
        %1703 = vmatprep.subr.mxu0 0.0
        %1704 = vmatpush1.msra.mxu0 0.0
        %1705 = vmatprep.subr.mxu0 0.0
        %1706 = vmatpush1.msra.mxu0 0.0
        %1707 = vmatprep.subr.mxu0 0.0
        %1708 = vmatpush1.msra.mxu0 0.0
        %1709 = vmatprep.subr.mxu0 0.0
        %1710 = vmatpush1.msra.mxu0 0.0
        %1711 = vmatprep.subr.mxu0 0.0
        %1712 = vmatpush1.msra.mxu0 0.0
        %1713 = vmatprep.subr.mxu0 0.0
        %1714 = vmatpush1.msra.mxu0 0.0
        %1715 = vmatprep.subr.mxu0 0.0
        %1716 = vmatpush1.msra.mxu0 0.0
        %1717 = vmatprep.subr.mxu0 0.0
        %1718 = vmatpush1.msra.mxu0 0.0
        %1719 = vmatprep.subr.mxu0 0.0
        %1720 = vmatpush1.msra.mxu0 0.0
        %1721 = vmatprep.subr.mxu0 0.0
        %1722 = vmatpush1.msra.mxu0 0.0
        %1723 = vmatprep.subr.mxu0 0.0
        %1724 = vmatpush1.msra.mxu0 0.0
        %1725 = vmatprep.subr.mxu0 0.0
        %1726 = vmatpush1.msra.mxu0 0.0
        %1727 = vmatprep.mubr.f32.mxu0 0.0
        %1728 = vmatmul.mubr.f32.gmra.mrb[0].mxu0 %v1661
        %v1729 = vpop.f32.mrb[0].mxu0
        %v1730 = vadd.f32 0.0, %v1729
        %v1731 = vpop.f32.mrb[0].mxu0
        %1732 = vdwg.mxu0
        %1733 = vrot.lane.b32.xlu0 %v725, 64
        %v1734 = vpop.permute.xlu0 %1733
        %v1737 = vsel %vm734, %v1425, 0
        %1739 = vmatprep.subr.mxu0 0.0
        %1740 = vmatpush1.msra.mxu0 %v1734
        %1741 = vmatprep.subr.mxu0 0.0
        %1742 = vmatpush1.msra.mxu0 0.0
        %1743 = vmatprep.subr.mxu0 0.0
        %1744 = vmatpush1.msra.mxu0 0.0
        %1745 = vmatprep.subr.mxu0 0.0
        %1746 = vmatpush1.msra.mxu0 0.0
        %1747 = vmatprep.subr.mxu0 0.0
        %1748 = vmatpush1.msra.mxu0 0.0
        %1749 = vmatprep.subr.mxu0 0.0
        %1750 = vmatpush1.msra.mxu0 0.0
        %1751 = vmatprep.subr.mxu0 0.0
        %1752 = vmatpush1.msra.mxu0 0.0
        %1753 = vmatprep.subr.mxu0 0.0
        %1754 = vmatpush1.msra.mxu0 0.0
        %1755 = vmatprep.subr.mxu0 0.0
        %1756 = vmatpush1.msra.mxu0 0.0
        %1757 = vmatprep.subr.mxu0 0.0
        %1758 = vmatpush1.msra.mxu0 0.0
        %1759 = vmatprep.subr.mxu0 0.0
        %1760 = vmatpush1.msra.mxu0 0.0
        %1761 = vmatprep.subr.mxu0 0.0
        %1762 = vmatpush1.msra.mxu0 0.0
        %1763 = vmatprep.subr.mxu0 0.0
        %1764 = vmatpush1.msra.mxu0 0.0
        %1765 = vmatprep.subr.mxu0 0.0
        %1766 = vmatpush1.msra.mxu0 0.0
        %1767 = vmatprep.subr.mxu0 0.0
        %1768 = vmatpush1.msra.mxu0 0.0
        %1769 = vmatprep.subr.mxu0 0.0
        %1770 = vmatpush1.msra.mxu0 0.0
        %1771 = vmatprep.subr.mxu0 0.0
        %1772 = vmatpush1.msra.mxu0 0.0
        %1773 = vmatprep.subr.mxu0 0.0
        %1774 = vmatpush1.msra.mxu0 0.0
        %1775 = vmatprep.subr.mxu0 0.0
        %1776 = vmatpush1.msra.mxu0 0.0
        %1777 = vmatprep.subr.mxu0 0.0
        %1778 = vmatpush1.msra.mxu0 0.0
        %1779 = vmatprep.subr.mxu0 0.0
        %1780 = vmatpush1.msra.mxu0 0.0
        %1781 = vmatprep.subr.mxu0 0.0
        %1782 = vmatpush1.msra.mxu0 0.0
        %1783 = vmatprep.subr.mxu0 0.0
        %1784 = vmatpush1.msra.mxu0 0.0
        %1785 = vmatprep.subr.mxu0 0.0
        %1786 = vmatpush1.msra.mxu0 0.0
        %1787 = vmatprep.subr.mxu0 0.0
        %1788 = vmatpush1.msra.mxu0 0.0
        %1789 = vmatprep.subr.mxu0 0.0
        %1790 = vmatpush1.msra.mxu0 0.0
        %1791 = vmatprep.subr.mxu0 0.0
        %1792 = vmatpush1.msra.mxu0 0.0
        %1793 = vmatprep.subr.mxu0 0.0
        %1794 = vmatpush1.msra.mxu0 0.0
        %1795 = vmatprep.subr.mxu0 0.0
        %1796 = vmatpush1.msra.mxu0 0.0
        %1797 = vmatprep.subr.mxu0 0.0
        %1798 = vmatpush1.msra.mxu0 0.0
        %1799 = vmatprep.subr.mxu0 0.0
        %1800 = vmatpush1.msra.mxu0 0.0
        %1801 = vmatprep.subr.mxu0 0.0
        %1802 = vmatpush1.msra.mxu0 0.0
        %1803 = vmatprep.mubr.f32.mxu0 0.0
        %1804 = vmatmul.mubr.f32.gmra.mrb[0].mxu0 %v1737
        %v1805 = vpop.f32.mrb[0].mxu0
        %v1806 = vadd.f32 0.0, %v1805
        %v1807 = vpop.f32.mrb[0].mxu0
        %1808 = vdwg.mxu0
        %1809 = vrot.lane.b32.xlu0 %v727, 64
        %v1810 = vpop.permute.xlu0 %1809
        %v1813 = vsel %vm734, %v1426, 0
        %1815 = vmatprep.subr.mxu0 0.0
        %1816 = vmatpush1.msra.mxu0 %v1810
        %1817 = vmatprep.subr.mxu0 0.0
        %1818 = vmatpush1.msra.mxu0 0.0
        %1819 = vmatprep.subr.mxu0 0.0
        %1820 = vmatpush1.msra.mxu0 0.0
        %1821 = vmatprep.subr.mxu0 0.0
        %1822 = vmatpush1.msra.mxu0 0.0
        %1823 = vmatprep.subr.mxu0 0.0
        %1824 = vmatpush1.msra.mxu0 0.0
        %1825 = vmatprep.subr.mxu0 0.0
        %1826 = vmatpush1.msra.mxu0 0.0
        %1827 = vmatprep.subr.mxu0 0.0
        %1828 = vmatpush1.msra.mxu0 0.0
        %1829 = vmatprep.subr.mxu0 0.0
        %1830 = vmatpush1.msra.mxu0 0.0
        %1831 = vmatprep.subr.mxu0 0.0
        %1832 = vmatpush1.msra.mxu0 0.0
        %1833 = vmatprep.subr.mxu0 0.0
        %1834 = vmatpush1.msra.mxu0 0.0
        %1835 = vmatprep.subr.mxu0 0.0
        %1836 = vmatpush1.msra.mxu0 0.0
        %1837 = vmatprep.subr.mxu0 0.0
        %1838 = vmatpush1.msra.mxu0 0.0
        %1839 = vmatprep.subr.mxu0 0.0
        %1840 = vmatpush1.msra.mxu0 0.0
        %1841 = vmatprep.subr.mxu0 0.0
        %1842 = vmatpush1.msra.mxu0 0.0
        %1843 = vmatprep.subr.mxu0 0.0
        %1844 = vmatpush1.msra.mxu0 0.0
        %1845 = vmatprep.subr.mxu0 0.0
        %1846 = vmatpush1.msra.mxu0 0.0
        %1847 = vmatprep.subr.mxu0 0.0
        %1848 = vmatpush1.msra.mxu0 0.0
        %1849 = vmatprep.subr.mxu0 0.0
        %1850 = vmatpush1.msra.mxu0 0.0
        %1851 = vmatprep.subr.mxu0 0.0
        %1852 = vmatpush1.msra.mxu0 0.0
        %1853 = vmatprep.subr.mxu0 0.0
        %1854 = vmatpush1.msra.mxu0 0.0
        %1855 = vmatprep.subr.mxu0 0.0
        %1856 = vmatpush1.msra.mxu0 0.0
        %1857 = vmatprep.subr.mxu0 0.0
        %1858 = vmatpush1.msra.mxu0 0.0
        %1859 = vmatprep.subr.mxu0 0.0
        %1860 = vmatpush1.msra.mxu0 0.0
        %1861 = vmatprep.subr.mxu0 0.0
        %1862 = vmatpush1.msra.mxu0 0.0
        %1863 = vmatprep.subr.mxu0 0.0
        %1864 = vmatpush1.msra.mxu0 0.0
        %1865 = vmatprep.subr.mxu0 0.0
        %1866 = vmatpush1.msra.mxu0 0.0
        %1867 = vmatprep.subr.mxu0 0.0
        %1868 = vmatpush1.msra.mxu0 0.0
        %1869 = vmatprep.subr.mxu0 0.0
        %1870 = vmatpush1.msra.mxu0 0.0
        %1871 = vmatprep.subr.mxu0 0.0
        %1872 = vmatpush1.msra.mxu0 0.0
        %1873 = vmatprep.subr.mxu0 0.0
        %1874 = vmatpush1.msra.mxu0 0.0
        %1875 = vmatprep.subr.mxu0 0.0
        %1876 = vmatpush1.msra.mxu0 0.0
        %1877 = vmatprep.subr.mxu0 0.0
        %1878 = vmatpush1.msra.mxu0 0.0
        %1879 = vmatprep.mubr.f32.mxu0 0.0
        %1880 = vmatmul.mubr.f32.gmra.mrb[0].mxu0 %v1813
        %v1881 = vpop.f32.mrb[0].mxu0
        %v1882 = vadd.f32 0.0, %v1881
        %v1883 = vpop.f32.mrb[0].mxu0
        %1884 = vdwg.mxu0
        %1885 = vrot.lane.b32.xlu0 %v729, 64
        %v1886 = vpop.permute.xlu0 %1885
        %v1889 = vsel %vm734, %v1427, 0
        %1891 = vmatprep.subr.mxu0 0.0
        %1892 = vmatpush1.msra.mxu0 %v1886
        %1893 = vmatprep.subr.mxu0 0.0
        %1894 = vmatpush1.msra.mxu0 0.0
        %1895 = vmatprep.subr.mxu0 0.0
        %1896 = vmatpush1.msra.mxu0 0.0
        %1897 = vmatprep.subr.mxu0 0.0
        %1898 = vmatpush1.msra.mxu0 0.0
        %1899 = vmatprep.subr.mxu0 0.0
        %1900 = vmatpush1.msra.mxu0 0.0
        %1901 = vmatprep.subr.mxu0 0.0
        %1902 = vmatpush1.msra.mxu0 0.0
        %1903 = vmatprep.subr.mxu0 0.0
        %1904 = vmatpush1.msra.mxu0 0.0
        %1905 = vmatprep.subr.mxu0 0.0
        %1906 = vmatpush1.msra.mxu0 0.0
        %1907 = vmatprep.subr.mxu0 0.0
        %1908 = vmatpush1.msra.mxu0 0.0
        %1909 = vmatprep.subr.mxu0 0.0
        %1910 = vmatpush1.msra.mxu0 0.0
        %1911 = vmatprep.subr.mxu0 0.0
        %1912 = vmatpush1.msra.mxu0 0.0
        %1913 = vmatprep.subr.mxu0 0.0
        %1914 = vmatpush1.msra.mxu0 0.0
        %1915 = vmatprep.subr.mxu0 0.0
        %1916 = vmatpush1.msra.mxu0 0.0
        %1917 = vmatprep.subr.mxu0 0.0
        %1918 = vmatpush1.msra.mxu0 0.0
        %1919 = vmatprep.subr.mxu0 0.0
        %1920 = vmatpush1.msra.mxu0 0.0
        %1921 = vmatprep.subr.mxu0 0.0
        %1922 = vmatpush1.msra.mxu0 0.0
        %1923 = vmatprep.subr.mxu0 0.0
        %1924 = vmatpush1.msra.mxu0 0.0
        %1925 = vmatprep.subr.mxu0 0.0
        %1926 = vmatpush1.msra.mxu0 0.0
        %1927 = vmatprep.subr.mxu0 0.0
        %1928 = vmatpush1.msra.mxu0 0.0
        %1929 = vmatprep.subr.mxu0 0.0
        %1930 = vmatpush1.msra.mxu0 0.0
        %1931 = vmatprep.subr.mxu0 0.0
        %1932 = vmatpush1.msra.mxu0 0.0
        %1933 = vmatprep.subr.mxu0 0.0
        %1934 = vmatpush1.msra.mxu0 0.0
        %1935 = vmatprep.subr.mxu0 0.0
        %1936 = vmatpush1.msra.mxu0 0.0
        %1937 = vmatprep.subr.mxu0 0.0
        %1938 = vmatpush1.msra.mxu0 0.0
        %1939 = vmatprep.subr.mxu0 0.0
        %1940 = vmatpush1.msra.mxu0 0.0
        %1941 = vmatprep.subr.mxu0 0.0
        %1942 = vmatpush1.msra.mxu0 0.0
        %1943 = vmatprep.subr.mxu0 0.0
        %1944 = vmatpush1.msra.mxu0 0.0
        %1945 = vmatprep.subr.mxu0 0.0
        %1946 = vmatpush1.msra.mxu0 0.0
        %1947 = vmatprep.subr.mxu0 0.0
        %1948 = vmatpush1.msra.mxu0 0.0
        %1949 = vmatprep.subr.mxu0 0.0
        %1950 = vmatpush1.msra.mxu0 0.0
        %1951 = vmatprep.subr.mxu0 0.0
        %1952 = vmatpush1.msra.mxu0 0.0
        %1953 = vmatprep.subr.mxu0 0.0
        %1954 = vmatpush1.msra.mxu0 0.0
        %1955 = vmatprep.mubr.f32.mxu0 0.0
        %1956 = vmatmul.mubr.f32.gmra.mrb[0].mxu0 %v1889
        %v1957 = vpop.f32.mrb[0].mxu0
        %v1958 = vadd.f32 0.0, %v1957
        %v1959 = vpop.f32.mrb[0].mxu0
        %1960 = vdwg.mxu0
        %1961 = vrot.lane.b32.xlu0 %v731, 64
        %v1962 = vpop.permute.xlu0 %1961
        %v1965 = vsel %vm734, %v1428, 0
        %1967 = vmatprep.subr.mxu0 0.0
        %1968 = vmatpush1.msra.mxu0 %v1962
        %1969 = vmatprep.subr.mxu0 0.0
        %1970 = vmatpush1.msra.mxu0 0.0
        %1971 = vmatprep.subr.mxu0 0.0
        %1972 = vmatpush1.msra.mxu0 0.0
        %1973 = vmatprep.subr.mxu0 0.0
        %1974 = vmatpush1.msra.mxu0 0.0
        %1975 = vmatprep.subr.mxu0 0.0
        %1976 = vmatpush1.msra.mxu0 0.0
        %1977 = vmatprep.subr.mxu0 0.0
        %1978 = vmatpush1.msra.mxu0 0.0
        %1979 = vmatprep.subr.mxu0 0.0
        %1980 = vmatpush1.msra.mxu0 0.0
        %1981 = vmatprep.subr.mxu0 0.0
        %1982 = vmatpush1.msra.mxu0 0.0
        %1983 = vmatprep.subr.mxu0 0.0
        %1984 = vmatpush1.msra.mxu0 0.0
        %1985 = vmatprep.subr.mxu0 0.0
        %1986 = vmatpush1.msra.mxu0 0.0
        %1987 = vmatprep.subr.mxu0 0.0
        %1988 = vmatpush1.msra.mxu0 0.0
        %1989 = vmatprep.subr.mxu0 0.0
        %1990 = vmatpush1.msra.mxu0 0.0
        %1991 = vmatprep.subr.mxu0 0.0
        %1992 = vmatpush1.msra.mxu0 0.0
        %1993 = vmatprep.subr.mxu0 0.0
        %1994 = vmatpush1.msra.mxu0 0.0
        %1995 = vmatprep.subr.mxu0 0.0
        %1996 = vmatpush1.msra.mxu0 0.0
        %1997 = vmatprep.subr.mxu0 0.0
        %1998 = vmatpush1.msra.mxu0 0.0
        %1999 = vmatprep.subr.mxu0 0.0
        %2000 = vmatpush1.msra.mxu0 0.0
        %2001 = vmatprep.subr.mxu0 0.0
        %2002 = vmatpush1.msra.mxu0 0.0
        %2003 = vmatprep.subr.mxu0 0.0
        %2004 = vmatpush1.msra.mxu0 0.0
        %2005 = vmatprep.subr.mxu0 0.0
        %2006 = vmatpush1.msra.mxu0 0.0
        %2007 = vmatprep.subr.mxu0 0.0
        %2008 = vmatpush1.msra.mxu0 0.0
        %2009 = vmatprep.subr.mxu0 0.0
        %2010 = vmatpush1.msra.mxu0 0.0
        %2011 = vmatprep.subr.mxu0 0.0
        %2012 = vmatpush1.msra.mxu0 0.0
        %2013 = vmatprep.subr.mxu0 0.0
        %2014 = vmatpush1.msra.mxu0 0.0
        %2015 = vmatprep.subr.mxu0 0.0
        %2016 = vmatpush1.msra.mxu0 0.0
        %2017 = vmatprep.subr.mxu0 0.0
        %2018 = vmatpush1.msra.mxu0 0.0
        %2019 = vmatprep.subr.mxu0 0.0
        %2020 = vmatpush1.msra.mxu0 0.0
        %2021 = vmatprep.subr.mxu0 0.0
        %2022 = vmatpush1.msra.mxu0 0.0
        %2023 = vmatprep.subr.mxu0 0.0
        %2024 = vmatpush1.msra.mxu0 0.0
        %2025 = vmatprep.subr.mxu0 0.0
        %2026 = vmatpush1.msra.mxu0 0.0
        %2027 = vmatprep.subr.mxu0 0.0
        %2028 = vmatpush1.msra.mxu0 0.0
        %2029 = vmatprep.subr.mxu0 0.0
        %2030 = vmatpush1.msra.mxu0 0.0
        %2031 = vmatprep.mubr.f32.mxu0 0.0
        %2032 = vmatmul.mubr.f32.gmra.mrb[0].mxu0 %v1965
        %v2033 = vpop.f32.mrb[0].mxu0
        %v2034 = vadd.f32 0.0, %v2033
        %v2035 = vpop.f32.mrb[0].mxu0
        %2036 = vdwg.mxu0
        %2039 = vrot.lane.b32.xlu0 %v1654, 8
        %v2040 = vpop.permute.xlu0 %2039
        %2041 = vrot.lane.b32.xlu0 %v1730, 8
        %v2042 = vpop.permute.xlu0 %2041
        %2047 = vrot.lane.b32.xlu0 %v1806, 16
        %v2048 = vpop.permute.xlu0 %2047
        %2049 = vrot.lane.b32.xlu0 %v1882, 16
        %v2050 = vpop.permute.xlu0 %2049
        %2055 = vrot.lane.b32.xlu0 %v1958, 24
        %v2056 = vpop.permute.xlu0 %2055
        %2057 = vrot.lane.b32.xlu0 %v2034, 24
        %v2058 = vpop.permute.xlu0 %2057
        %v2061 = vsel %vm734, %v1502, %v2040
        %v2062 = vsel %vm734, %v1578, %v2042
        %vm2063 = vcmask 130048
        %v2064 = vsel %vm2063, %v2061, %v2048
        %v2065 = vsel %vm2063, %v2062, %v2050
        %vm2066 = vcmask 195584
        %v2067 = vsel %vm2066, %v2064, %v2056
        %v2068 = vsel %vm2066, %v2065, %v2058
        %v2069 = vld [vmem:[%s582] sm:$0xff]
        %v2070 = vld [vmem:[%s582 + $0x8] sm:$0xff]
        %v2071 = vld [vmem:[%s582 + $0x10] sm:$0xff]
        %v2072 = vld [vmem:[%s582 + $0x18] sm:$0xff]
        %v2073 = vld [vmem:[%s585] sm:$0x1]
        %v2075 = vlaneseq
        %v2076 = vshrl.u32 %v2075, 7
        %v2077 = vsub.s32 0, %v2076
        %v2078 = vrot.slane %v2073, %v2077
        %v2081 = vsel %vm636, %v2067, 0
        %v2084 = vsel %vm636, %v2068, 0
        %2086 = vmatprep.subr.mxu0 0.0
        %2087 = vmatpush1.msra.mxu0 %v2069
        %2088 = vmatprep.subr.mxu0 0.0
        %2089 = vmatpush1.msra.mxu0 %v2070
        %2090 = vmatprep.subr.mxu0 0.0
        %2091 = vmatpush1.msra.mxu0 %v2071
        %2092 = vmatprep.subr.mxu0 0.0
        %2093 = vmatpush1.msra.mxu0 %v2072
        %2094 = vmatprep.subr.mxu0 0.0
        %2095 = vmatpush1.msra.mxu0 0.0
        %2096 = vmatprep.subr.mxu0 0.0
        %2097 = vmatpush1.msra.mxu0 0.0
        %2098 = vmatprep.subr.mxu0 0.0
        %2099 = vmatpush1.msra.mxu0 0.0
        %2100 = vmatprep.subr.mxu0 0.0
        %2101 = vmatpush1.msra.mxu0 0.0
        %2102 = vmatprep.subr.mxu0 0.0
        %2103 = vmatpush1.msra.mxu0 0.0
        %2104 = vmatprep.subr.mxu0 0.0
        %2105 = vmatpush1.msra.mxu0 0.0
        %2106 = vmatprep.subr.mxu0 0.0
        %2107 = vmatpush1.msra.mxu0 0.0
        %2108 = vmatprep.subr.mxu0 0.0
        %2109 = vmatpush1.msra.mxu0 0.0
        %2110 = vmatprep.subr.mxu0 0.0
        %2111 = vmatpush1.msra.mxu0 0.0
        %2112 = vmatprep.subr.mxu0 0.0
        %2113 = vmatpush1.msra.mxu0 0.0
        %2114 = vmatprep.subr.mxu0 0.0
        %2115 = vmatpush1.msra.mxu0 0.0
        %2116 = vmatprep.subr.mxu0 0.0
        %2117 = vmatpush1.msra.mxu0 0.0
        %2118 = vmatprep.subr.mxu0 0.0
        %2119 = vmatpush1.msra.mxu0 0.0
        %2120 = vmatprep.subr.mxu0 0.0
        %2121 = vmatpush1.msra.mxu0 0.0
        %2122 = vmatprep.subr.mxu0 0.0
        %2123 = vmatpush1.msra.mxu0 0.0
        %2124 = vmatprep.subr.mxu0 0.0
        %2125 = vmatpush1.msra.mxu0 0.0
        %2126 = vmatprep.subr.mxu0 0.0
        %2127 = vmatpush1.msra.mxu0 0.0
        %2128 = vmatprep.subr.mxu0 0.0
        %2129 = vmatpush1.msra.mxu0 0.0
        %2130 = vmatprep.subr.mxu0 0.0
        %2131 = vmatpush1.msra.mxu0 0.0
        %2132 = vmatprep.subr.mxu0 0.0
        %2133 = vmatpush1.msra.mxu0 0.0
        %2134 = vmatprep.subr.mxu0 0.0
        %2135 = vmatpush1.msra.mxu0 0.0
        %2136 = vmatprep.subr.mxu0 0.0
        %2137 = vmatpush1.msra.mxu0 0.0
        %2138 = vmatprep.subr.mxu0 0.0
        %2139 = vmatpush1.msra.mxu0 0.0
        %2140 = vmatprep.subr.mxu0 0.0
        %2141 = vmatpush1.msra.mxu0 0.0
        %2142 = vmatprep.subr.mxu0 0.0
        %2143 = vmatpush1.msra.mxu0 0.0
        %2144 = vmatprep.subr.mxu0 0.0
        %2145 = vmatpush1.msra.mxu0 0.0
        %2146 = vmatprep.subr.mxu0 0.0
        %2147 = vmatpush1.msra.mxu0 0.0
        %2148 = vmatprep.subr.mxu0 0.0
        %2149 = vmatpush1.msra.mxu0 0.0
        %2150 = vmatprep.mubr.f32.mxu0 0.0
        %2151 = vmatmul.mubr.f32.gmra.mrb[0].mxu0 %v2081
        %v2152 = vpop.f32.mrb[0].mxu0
        %v2153 = vadd.f32 %v2078, %v2152
        %v2154 = vpop.f32.mrb[0].mxu0
        %2155 = vmatprep.mubr.f32.mxu0 0.0
        %2156 = vmatmul.mubr.f32.gmra.mrb[0].mxu0 %v2084
        %v2157 = vpop.f32.mrb[0].mxu0
        %v2158 = vadd.f32 %v2078, %v2157
        %v2159 = vpop.f32.mrb[0].mxu0
        %2160 = vdwg.mxu0
        %v2161 = vadd.f32 %v623, %v2153
        %v2162 = vadd.f32 %v624, %v2158
        %v2163 = vld [vmem:[%s604] sm:$0x1]
        %v2164 = vld [vmem:[%s607] sm:$0x1]
        %v2165 = vsel %vm636, %v2161, 0.0
        %2166 = vadd.xlane.f32.xlu0 %v2165
        %v2167 = vpop.xlane.xlu0 %2166
        %v2168 = vsel %vm636, %v2162, 0.0
        %2169 = vadd.xlane.f32.xlu0 %v2168
        %v2170 = vpop.xlane.xlu0 %2169
        %v2171 = vrcp.pop 32.0
        %v2172 = vmul.f32 %v2167, %v2171
        %v2173 = vmul.f32 %v2170, %v2171
        %v2174 = vmul.f32 %v2161, %v2161
        %v2175 = vmul.f32 %v2162, %v2162
        %v2176 = vsel %vm636, %v2174, 0.0
        %2177 = vadd.xlane.f32.xlu0 %v2176
        %v2178 = vpop.xlane.xlu0 %2177
        %v2179 = vsel %vm636, %v2175, 0.0
        %2180 = vadd.xlane.f32.xlu0 %v2179
        %v2181 = vpop.xlane.xlu0 %2180
        %v2182 = vmul.f32 %v2178, %v2171
        %v2183 = vmul.f32 %v2181, %v2171
        %v2184 = vmul.f32 %v2172, %v2172
        %v2185 = vmul.f32 %v2173, %v2173
        %v2186 = vsub.f32 %v2182, %v2184
        %v2187 = vsub.f32 %v2183, %v2185
        %v2188 = vadd.f32 %v2186, 1e-05
        %v2189 = vadd.f32 %v2187, 1e-05
        %v2190 = vrsqrt.pop %v2188
        %v2191 = vrsqrt.pop %v2189
        %v2192 = vsub.f32 %v2161, %v2172
        %v2193 = vsub.f32 %v2162, %v2173
        %v2194 = vmul.f32 %v2192, %v2190
        %v2195 = vmul.f32 %v2193, %v2191
        %v2197 = vlaneseq
        %v2198 = vshrl.u32 %v2197, 7
        %v2199 = vsub.s32 0, %v2198
        %v2200 = vrot.slane %v2163, %v2199
        %v2202 = vmul.f32 %v2194, %v2200
        %v2203 = vmul.f32 %v2195, %v2200
        %v2205 = vlaneseq
        %v2206 = vshrl.u32 %v2205, 7
        %v2207 = vsub.s32 0, %v2206
        %v2208 = vrot.slane %v2164, %v2207
        %v2210 = vadd.f32 %v2202, %v2208
        %v2211 = vadd.f32 %v2203, %v2208
        %v2212 = vld [vmem:[%s590] sm:$0xff]
        %v2213 = vld [vmem:[%s590 + $0x8] sm:$0xff]
        %v2214 = vld [vmem:[%s590 + $0x10] sm:$0xff]
        %v2215 = vld [vmem:[%s590 + $0x18] sm:$0xff]
        %v2216 = vld [vmem:[%s593] sm:$0x1]
        %v2218 = vlaneseq
        %v2219 = vshrl.u32 %v2218, 7
        %v2220 = vsub.s32 0, %v2219
        %v2221 = vrot.slane %v2216, %v2220
        %v2224 = vsel %vm636, %v2210, 0
        %v2227 = vsel %vm636, %v2211, 0
        %2229 = vmatprep.subr.mxu0 0.0
        %2230 = vmatpush1.msra.mxu0 %v2212
        %2231 = vmatprep.subr.mxu0 0.0
        %2232 = vmatpush1.msra.mxu0 %v2213
        %2233 = vmatprep.subr.mxu0 0.0
        %2234 = vmatpush1.msra.mxu0 %v2214
        %2235 = vmatprep.subr.mxu0 0.0
        %2236 = vmatpush1.msra.mxu0 %v2215
        %2237 = vmatprep.subr.mxu0 0.0
        %2238 = vmatpush1.msra.mxu0 0.0
        %2239 = vmatprep.subr.mxu0 0.0
        %2240 = vmatpush1.msra.mxu0 0.0
        %2241 = vmatprep.subr.mxu0 0.0
        %2242 = vmatpush1.msra.mxu0 0.0
        %2243 = vmatprep.subr.mxu0 0.0
        %2244 = vmatpush1.msra.mxu0 0.0
        %2245 = vmatprep.subr.mxu0 0.0
        %2246 = vmatpush1.msra.mxu0 0.0
        %2247 = vmatprep.subr.mxu0 0.0
        %2248 = vmatpush1.msra.mxu0 0.0
        %2249 = vmatprep.subr.mxu0 0.0
        %2250 = vmatpush1.msra.mxu0 0.0
        %2251 = vmatprep.subr.mxu0 0.0
        %2252 = vmatpush1.msra.mxu0 0.0
        %2253 = vmatprep.subr.mxu0 0.0
        %2254 = vmatpush1.msra.mxu0 0.0
        %2255 = vmatprep.subr.mxu0 0.0
        %2256 = vmatpush1.msra.mxu0 0.0
        %2257 = vmatprep.subr.mxu0 0.0
        %2258 = vmatpush1.msra.mxu0 0.0
        %2259 = vmatprep.subr.mxu0 0.0
        %2260 = vmatpush1.msra.mxu0 0.0
        %2261 = vmatprep.subr.mxu0 0.0
        %2262 = vmatpush1.msra.mxu0 0.0
        %2263 = vmatprep.subr.mxu0 0.0
        %2264 = vmatpush1.msra.mxu0 0.0
        %2265 = vmatprep.subr.mxu0 0.0
        %2266 = vmatpush1.msra.mxu0 0.0
        %2267 = vmatprep.subr.mxu0 0.0
        %2268 = vmatpush1.msra.mxu0 0.0
        %2269 = vmatprep.subr.mxu0 0.0
        %2270 = vmatpush1.msra.mxu0 0.0
        %2271 = vmatprep.subr.mxu0 0.0
        %2272 = vmatpush1.msra.mxu0 0.0
        %2273 = vmatprep.subr.mxu0 0.0
        %2274 = vmatpush1.msra.mxu0 0.0
        %2275 = vmatprep.subr.mxu0 0.0
        %2276 = vmatpush1.msra.mxu0 0.0
        %2277 = vmatprep.subr.mxu0 0.0
        %2278 = vmatpush1.msra.mxu0 0.0
        %2279 = vmatprep.subr.mxu0 0.0
        %2280 = vmatpush1.msra.mxu0 0.0
        %2281 = vmatprep.subr.mxu0 0.0
        %2282 = vmatpush1.msra.mxu0 0.0
        %2283 = vmatprep.subr.mxu0 0.0
        %2284 = vmatpush1.msra.mxu0 0.0
        %2285 = vmatprep.subr.mxu0 0.0
        %2286 = vmatpush1.msra.mxu0 0.0
        %2287 = vmatprep.subr.mxu0 0.0
        %2288 = vmatpush1.msra.mxu0 0.0
        %2289 = vmatprep.subr.mxu0 0.0
        %2290 = vmatpush1.msra.mxu0 0.0
        %2291 = vmatprep.subr.mxu0 0.0
        %2292 = vmatpush1.msra.mxu0 0.0
        %2293 = vmatprep.mubr.f32.mxu0 0.0
        %2294 = vmatmul.mubr.f32.gmra.mrb[0].mxu0 %v2224
        %v2295 = vpop.f32.mrb[0].mxu0
        %v2296 = vadd.f32 %v2221, %v2295
        %v2297 = vpop.f32.mrb[0].mxu0
        %2298 = vmatprep.mubr.f32.mxu0 0.0
        %2299 = vmatmul.mubr.f32.gmra.mrb[0].mxu0 %v2227
        %v2300 = vpop.f32.mrb[0].mxu0
        %v2301 = vadd.f32 %v2221, %v2300
        %v2302 = vpop.f32.mrb[0].mxu0
        %2303 = vdwg.mxu0
        %v2304 = vmax.f32 %v2296, 0.0
        %v2305 = vmax.f32 %v2301, 0.0
        %v2306 = vld [vmem:[%s598] sm:$0xff]
        %v2307 = vld [vmem:[%s598 + $0x8] sm:$0xff]
        %v2308 = vld [vmem:[%s598 + $0x10] sm:$0xff]
        %v2309 = vld [vmem:[%s598 + $0x18] sm:$0xff]
        %v2310 = vld [vmem:[%s598 + $0x20] sm:$0xff]
        %v2311 = vld [vmem:[%s598 + $0x28] sm:$0xff]
        %v2312 = vld [vmem:[%s598 + $0x30] sm:$0xff]
        %v2313 = vld [vmem:[%s598 + $0x38] sm:$0xff]
        %v2314 = vld [vmem:[%s601] sm:$0x1]
        %v2316 = vlaneseq
        %v2317 = vshrl.u32 %v2316, 7
        %v2318 = vsub.s32 0, %v2317
        %v2319 = vrot.slane %v2314, %v2318
        %vm2321 = vcmask 523264
        %v2323 = vsel %vm2321, %v2304, 0
        %v2326 = vsel %vm2321, %v2305, 0
        %2328 = vmatprep.subr.mxu0 0.0
        %2329 = vmatpush1.msra.mxu0 %v2306
        %2330 = vmatprep.subr.mxu0 0.0
        %2331 = vmatpush1.msra.mxu0 %v2307
        %2332 = vmatprep.subr.mxu0 0.0
        %2333 = vmatpush1.msra.mxu0 %v2308
        %2334 = vmatprep.subr.mxu0 0.0
        %2335 = vmatpush1.msra.mxu0 %v2309
        %2336 = vmatprep.subr.mxu0 0.0
        %2337 = vmatpush1.msra.mxu0 %v2310
        %2338 = vmatprep.subr.mxu0 0.0
        %2339 = vmatpush1.msra.mxu0 %v2311
        %2340 = vmatprep.subr.mxu0 0.0
        %2341 = vmatpush1.msra.mxu0 %v2312
        %2342 = vmatprep.subr.mxu0 0.0
        %2343 = vmatpush1.msra.mxu0 %v2313
        %2344 = vmatprep.subr.mxu0 0.0
        %2345 = vmatpush1.msra.mxu0 0.0
        %2346 = vmatprep.subr.mxu0 0.0
        %2347 = vmatpush1.msra.mxu0 0.0
        %2348 = vmatprep.subr.mxu0 0.0
        %2349 = vmatpush1.msra.mxu0 0.0
        %2350 = vmatprep.subr.mxu0 0.0
        %2351 = vmatpush1.msra.mxu0 0.0
        %2352 = vmatprep.subr.mxu0 0.0
        %2353 = vmatpush1.msra.mxu0 0.0
        %2354 = vmatprep.subr.mxu0 0.0
        %2355 = vmatpush1.msra.mxu0 0.0
        %2356 = vmatprep.subr.mxu0 0.0
        %2357 = vmatpush1.msra.mxu0 0.0
        %2358 = vmatprep.subr.mxu0 0.0
        %2359 = vmatpush1.msra.mxu0 0.0
        %2360 = vmatprep.subr.mxu0 0.0
        %2361 = vmatpush1.msra.mxu0 0.0
        %2362 = vmatprep.subr.mxu0 0.0
        %2363 = vmatpush1.msra.mxu0 0.0
        %2364 = vmatprep.subr.mxu0 0.0
        %2365 = vmatpush1.msra.mxu0 0.0
        %2366 = vmatprep.subr.mxu0 0.0
        %2367 = vmatpush1.msra.mxu0 0.0
        %2368 = vmatprep.subr.mxu0 0.0
        %2369 = vmatpush1.msra.mxu0 0.0
        %2370 = vmatprep.subr.mxu0 0.0
        %2371 = vmatpush1.msra.mxu0 0.0
        %2372 = vmatprep.subr.mxu0 0.0
        %2373 = vmatpush1.msra.mxu0 0.0
        %2374 = vmatprep.subr.mxu0 0.0
        %2375 = vmatpush1.msra.mxu0 0.0
        %2376 = vmatprep.subr.mxu0 0.0
        %2377 = vmatpush1.msra.mxu0 0.0
        %2378 = vmatprep.subr.mxu0 0.0
        %2379 = vmatpush1.msra.mxu0 0.0
        %2380 = vmatprep.subr.mxu0 0.0
        %2381 = vmatpush1.msra.mxu0 0.0
        %2382 = vmatprep.subr.mxu0 0.0
        %2383 = vmatpush1.msra.mxu0 0.0
        %2384 = vmatprep.subr.mxu0 0.0
        %2385 = vmatpush1.msra.mxu0 0.0
        %2386 = vmatprep.subr.mxu0 0.0
        %2387 = vmatpush1.msra.mxu0 0.0
        %2388 = vmatprep.subr.mxu0 0.0
        %2389 = vmatpush1.msra.mxu0 0.0
        %2390 = vmatprep.subr.mxu0 0.0
        %2391 = vmatpush1.msra.mxu0 0.0
        %2392 = vmatprep.mubr.f32.mxu0 0.0
        %2393 = vmatmul.mubr.f32.gmra.mrb[0].mxu0 %v2323
        %v2394 = vpop.f32.mrb[0].mxu0
        %v2395 = vadd.f32 %v2319, %v2394
        %v2396 = vpop.f32.mrb[0].mxu0
        %2397 = vmatprep.mubr.f32.mxu0 0.0
        %2398 = vmatmul.mubr.f32.gmra.mrb[0].mxu0 %v2326
        %v2399 = vpop.f32.mrb[0].mxu0
        %v2400 = vadd.f32 %v2319, %v2399
        %v2401 = vpop.f32.mrb[0].mxu0
        %2402 = vdwg.mxu0
        %v2403 = vadd.f32 %v2210, %v2395
        %v2404 = vadd.f32 %v2211, %v2400
        %v2405 = vld [vmem:[%s610] sm:$0x1]
        %v2406 = vld [vmem:[%s613] sm:$0x1]
        %v2407 = vsel %vm636, %v2403, 0.0
        %2408 = vadd.xlane.f32.xlu0 %v2407
        %v2409 = vpop.xlane.xlu0 %2408
        %v2410 = vsel %vm636, %v2404, 0.0
        %2411 = vadd.xlane.f32.xlu0 %v2410
        %v2412 = vpop.xlane.xlu0 %2411
        %v2413 = vmul.f32 %v2409, %v2171
        %v2414 = vmul.f32 %v2412, %v2171
        %v2415 = vmul.f32 %v2403, %v2403
        %v2416 = vmul.f32 %v2404, %v2404
        %v2417 = vsel %vm636, %v2415, 0.0
        %2418 = vadd.xlane.f32.xlu0 %v2417
        %v2419 = vpop.xlane.xlu0 %2418
        %v2420 = vsel %vm636, %v2416, 0.0
        %2421 = vadd.xlane.f32.xlu0 %v2420
        %v2422 = vpop.xlane.xlu0 %2421
        %v2423 = vmul.f32 %v2419, %v2171
        %v2424 = vmul.f32 %v2422, %v2171
        %v2425 = vmul.f32 %v2413, %v2413
        %v2426 = vmul.f32 %v2414, %v2414
        %v2427 = vsub.f32 %v2423, %v2425
        %v2428 = vsub.f32 %v2424, %v2426
        %v2429 = vadd.f32 %v2427, 1e-05
        %v2430 = vadd.f32 %v2428, 1e-05
        %v2431 = vrsqrt.pop %v2429
        %v2432 = vrsqrt.pop %v2430
        %v2433 = vsub.f32 %v2403, %v2413
        %v2434 = vsub.f32 %v2404, %v2414
        %v2435 = vmul.f32 %v2433, %v2431
        %v2436 = vmul.f32 %v2434, %v2432
        %v2438 = vlaneseq
        %v2439 = vshrl.u32 %v2438, 7
        %v2440 = vsub.s32 0, %v2439
        %v2441 = vrot.slane %v2405, %v2440
        %v2443 = vmul.f32 %v2435, %v2441
        %v2444 = vmul.f32 %v2436, %v2441
        %v2446 = vlaneseq
        %v2447 = vshrl.u32 %v2446, 7
        %v2448 = vsub.s32 0, %v2447
        %v2449 = vrot.slane %v2406, %v2448
        %v2451 = vadd.f32 %v2443, %v2449
        %v2452 = vadd.f32 %v2444, %v2449
        %2453 = vst.msk [vmem:[#allocation5] sm:$0xff] %vm636, %v2451
        %2454 = vst.msk [vmem:[#allocation5 + $0x8] sm:$0xff] %vm636, %v2452
        %p2455 = scmp.eq.s32.totalorder %s26, 1
        // Predicated region
        $region81: #{tpu_custom_call.1} parent=71 // pred_check
          %p2456 = pneg %p2455
        $region82: #{tpu_custom_call.1} parent=71 // pred_check_branch
          %2458 = sbr.rel (%p2456) target = $region84
        $region83: #{tpu_custom_call.1} parent=71 // pred_region
          %vm2459 = vcmp.ge.f32.partialorder %v2451, 0.0
          %vm2460 = vcmp.ge.f32.partialorder %v2452, 0.0
          %v2461 = vmul.f32 %v2451, 0.01
          %v2462 = vmul.f32 %v2452, 0.01
          %v2463 = vsel %vm2459, %v2451, %v2461
          %v2464 = vsel %vm2460, %v2452, %v2462
          %2465 = vst.msk [vmem:[#allocation5] sm:$0xff] %vm636, %v2463
          %2466 = vst.msk [vmem:[#allocation5 + $0x8] sm:$0xff] %vm636, %v2464
        $region84: #{tpu_custom_call.1} parent=71 // pred_fallthru
          _
        // Predicated region
        $region85: #{tpu_custom_call.1} parent=71 // pred_check
          %p2467 = pneg %p372
        $region86: #{tpu_custom_call.1} parent=71 // pred_check_branch
          %2469 = sbr.rel (%p2467) target = $region88
        $region87: #{tpu_custom_call.1} parent=71 // pred_region
          %s2471 = ssub.s32 256, 256
          %2472 = vsyncadd [#allocation4], %s2471
          %s2473 = sshll.u32 [#allocation5], 4
          %s2474 = int_to_ptr.vmem [resolvable:$true] %s2473
          %2479 = dma.vmem_to_hbm [thread:$0]  %s2474, 256, %s13, [#allocation4], 128, 128, 8
        $region88: #{tpu_custom_call.1} parent=71 // pred_fallthru
          _
        // Predicated region
        $region89: #{tpu_custom_call.1} parent=71 // pred_check
          %p2480 = pneg %p372
        $region90: #{tpu_custom_call.1} parent=71 // pred_check_branch
          %2482 = sbr.rel (%p2480) target = $region92
        $region91: #{tpu_custom_call.1} parent=71 // pred_region
          %2483 = dma.done [#allocation4], 256
        $region92: #{tpu_custom_call.1} parent=71 // pred_fallthru
          _
      $region72: #{tpu_custom_call.1} parent=5 // pred_fallthru
        _
      %p2484 = scmp.le.s32.totalorder 2, %s21
      // Predicated region
      $region93: #{tpu_custom_call.1} parent=5 // pred_check
        %p2485 = pneg %p2484
      $region94: #{tpu_custom_call.1} parent=5 // pred_check_branch
        %2487 = sbr.rel (%p2485) target = $region96
      $region95: #{tpu_custom_call.1} parent=5 // pred_region
        %s2488 = ssub.s32 %s21, 2
      $region96: #{tpu_custom_call.1} parent=5 // pred_fallthru
        _
    $region6: #{tpu_custom_call.1} parent=1 // loop_footer
      %s25 = sadd.s32 1, %s21
    $region7: #{tpu_custom_call.1} parent=1 // loop_footer_branch
      %20 = sbr.rel target = $region3
    $region8: #{tpu_custom_call.1} parent=1 // loop_exit
      _
    %2489 = vsyncpa [#allocation3], 1
    %s2490 = scalar_lea.sflag [#allocation3], 1
    %2491 = vsyncpa %s2490, 1
    %2492 = vsyncpa [#allocation4], 1
    %s2493 = scalar_lea.sflag [#allocation4], 1
    %2494 = vsyncpa %s2493, 1

</llo_original>
